<compile_context>
chip_gen: v7x
topology: tpu7x:2x2x1
jax: 0.10.0
libtpu: 0.0.40
codegen_flags: <defaults>
</compile_context>

<pallas_src>
import jax
import jax.numpy as jnp
from jax.experimental import pallas as pl
from jax.experimental.pallas import tpu as pltpu

SLOPE = 0.25  # LeakyReLU negative slope


def _leaky(y):
    return jnp.where(y >= 0.0, y, SLOPE * y)


# ----------------------------------------------------------------------------
# The single fused kernel.  Per grid step it sees one batch tile of the three
# inputs / the output; all weights are full-array VMEM-resident blocks.
#   leaky+BN stage params: p = [bias; scale; shift]  (3, Dout)
#   folded (no-activation) stage params: bias only   (1, Dout), BN folded in W
# ----------------------------------------------------------------------------
def _nn_concat_kernel(
    x1_ref, x2_ref, x3_ref,
    w11, p11, w12, p12, w13, p13,      # block1 (stage2 folded: no LeakyReLU)
    w21, p21, w22, p22, w23, p23,      # block2
    w31, p31, w32, p32, w33, p33,      # block3
    wo1a, wo1b, wo1c, po1,             # head stage1, concat fused into 3 slabs
    wo2, bo2,                          # final Linear (BN-free, bias only)
    out_ref,
):
    def leaky_bn_stage(x, w_ref, p_ref):
        # BN_affine(LeakyReLU(x @ W + b))
        y = jnp.dot(x, w_ref[...], preferred_element_type=jnp.float32)
        p = p_ref[...]
        y = _leaky(y + p[0:1, :])
        return y * p[1:2, :] + p[2:3, :]

    def folded_stage(x, w_ref, b_ref):
        # No activation -> BN affine pre-folded into W and bias on the host.
        return jnp.dot(x, w_ref[...], preferred_element_type=jnp.float32) + b_ref[...]

    # --- branch 1 (no LeakyReLU on its second stage) ---
    h1 = leaky_bn_stage(x1_ref[...], w11, p11)
    h1 = folded_stage(h1, w12, p12)
    h1 = leaky_bn_stage(h1, w13, p13)

    # --- branch 2 ---
    h2 = leaky_bn_stage(x2_ref[...], w21, p21)
    h2 = leaky_bn_stage(h2, w22, p22)
    h2 = leaky_bn_stage(h2, w23, p23)

    # --- branch 3 ---
    h3 = leaky_bn_stage(x3_ref[...], w31, p31)
    h3 = leaky_bn_stage(h3, w32, p32)
    h3 = leaky_bn_stage(h3, w33, p33)

    # --- head stage 1: concat([h1,h2,h3]) @ Wo1  ==  3-way matmul accumulation
    y = jnp.dot(h1, wo1a[...], preferred_element_type=jnp.float32)
    y = y + jnp.dot(h2, wo1b[...], preferred_element_type=jnp.float32)
    y = y + jnp.dot(h3, wo1c[...], preferred_element_type=jnp.float32)
    p = po1[...]
    y = _leaky(y + p[0:1, :])
    y = y * p[1:2, :] + p[2:3, :]

    # --- final Linear ---
    logits = jnp.dot(y, wo2[...], preferred_element_type=jnp.float32) + bo2[...]
    out_ref[...] = logits.astype(out_ref.dtype)


# ----------------------------------------------------------------------------
# Wrapper: one pallas_call, 1-D "parallel" grid over batch tiles, weights
# resident in VMEM for every grid step.
# ----------------------------------------------------------------------------
def nn_concat_forward(kparams, x1, x2, x3):
    B = x1.shape[0]
    n_classes = kparams[-2].shape[1]          # folded Wo2 is (100, n_classes)

    # Batch tile: multiple of 8 sublanes, capped at 128 rows per grid step.
    bm = min(128, ((B + 7) // 8) * 8)
    bp = pl.cdiv(B, bm) * bm
    if bp != B:
        pad = bp - B
        x1 = jnp.pad(x1, ((0, pad), (0, 0)))
        x2 = jnp.pad(x2, ((0, pad), (0, 0)))
        x3 = jnp.pad(x3, ((0, pad), (0, 0)))
    grid = (bp // bm,)

    def batch_spec(d):
        return pl.BlockSpec((bm, d), lambda i: (i, 0))

    def const_spec(a):
        return pl.BlockSpec(a.shape, lambda i: (0,) * a.ndim)

    in_specs = ([batch_spec(x1.shape[1]), batch_spec(x2.shape[1]),
                 batch_spec(x3.shape[1])]
                + [const_spec(a) for a in kparams])
    out_spec = pl.BlockSpec((bm, n_classes), lambda i: (i, 0))

    out = pl.pallas_call(
        _nn_concat_kernel,
        out_shape=jax.ShapeDtypeStruct((bp, n_classes), jnp.float32),
        grid=grid,
        in_specs=in_specs,
        out_specs=out_spec,
        compiler_params=pltpu.CompilerParams(
            dimension_semantics=("parallel",)),
    )(x1, x2, x3, *kparams)
    return out[:B] if bp != B else out


# ----------------------------------------------------------------------------
# Parameter construction (deterministic, synthetic) — PyTorch-style init.
# ----------------------------------------------------------------------------
def _make_stage_params(key, din, dout, *, with_bn=True):
    """Returns (W, b, scale, shift) for one Linear(+BN) stage (eval-mode fold)."""
    kw, kb, kg, kbe, km, kv = jax.random.split(key, 6)
    lim = 1.0 / jnp.sqrt(jnp.float32(din))
    W = jax.random.uniform(kw, (din, dout), jnp.float32, -lim, lim)
    b = jax.random.uniform(kb, (1, dout), jnp.float32, -lim, lim)
    if with_bn:
        eps = 1e-5
        gamma = 1.0 + 0.1 * jax.random.normal(kg, (1, dout), jnp.float32)
        beta = 0.1 * jax.random.normal(kbe, (1, dout), jnp.float32)
        r_mean = 0.1 * jax.random.normal(km, (1, dout), jnp.float32)
        r_var = 0.5 + jnp.abs(jax.random.normal(kv, (1, dout), jnp.float32))
        scale = gamma / jnp.sqrt(r_var + eps)
        shift = beta - r_mean * scale
    else:
        scale = jnp.ones((1, dout), jnp.float32)
        shift = jnp.zeros((1, dout), jnp.float32)
    return W, b, scale, shift


def _make_block_params(key, input_size, dims):
    d1, d2, d3 = dims
    k1, k2, k3 = jax.random.split(key, 3)
    return (
        _make_stage_params(k1, input_size, d1),
        _make_stage_params(k2, d1, d2),
        _make_stage_params(k3, d2, d3),
    )


def _pack_leaky_stage(stage):
    W, b, s, t = stage
    return [W, jnp.concatenate([b, s, t], axis=0)]          # (din,dout), (3,dout)


def _fold_plain_stage(stage):
    W, b, s, t = stage
    return [W * s, b * s + t]                                # BN folded into W/bias


def prepare_params(params, dim3):
    """Flatten params into the fixed kernel-argument order (done once, host)."""
    b1s1, b1s2, b1s3 = params["block1"]
    b2s1, b2s2, b2s3 = params["block2"]
    b3s1, b3s2, b3s3 = params["block3"]
    (Wo1, bo1, so1, to1), out_final = params["out"]

    flat = []
    flat += _pack_leaky_stage(b1s1)
    flat += _fold_plain_stage(b1s2)          # block1 stage2 has no LeakyReLU
    flat += _pack_leaky_stage(b1s3)
    for st in (b2s1, b2s2, b2s3, b3s1, b3s2, b3s3):
        flat += _pack_leaky_stage(st)
    # Head stage1: split Wo1 (3*dim3, 100) into per-branch slabs (concat fusion).
    flat += [
        Wo1[0:dim3, :], Wo1[dim3:2 * dim3, :], Wo1[2 * dim3:3 * dim3, :],
        jnp.concatenate([bo1, so1, to1], axis=0),
    ]
    flat += _fold_plain_stage(out_final)     # no BN -> fold is the identity
    return flat


# ----------------------------------------------------------------------------
# Pure-JAX reference (eval-mode semantics) for correctness checking.
# ----------------------------------------------------------------------------
def nn_concat_reference(params, x1, x2, x3):
    def stage(x, st, act):
        W, b, s, t = st
        y = x @ W + b
        if act:
            y = jnp.where(y >= 0.0, y, SLOPE * y)
        return y * s + t

    def block(x, stages, acts):
        for st, a in zip(stages, acts):
            x = stage(x, st, a)
        return x

    h1 = block(x1, params["block1"], (True, False, True))
    h2 = block(x2, params["block2"], (True, True, True))
    h3 = block(x3, params["block3"], (True, True, True))
    comb = jnp.concatenate([h1, h2, h3], axis=1)
    st1, st2 = params["out"]
    y = stage(comb, st1, True)
    return stage(y, st2, False)   # final stage: scale=1, shift=0 (no BN)


if __name__ == "__main__":
    # ROSMAP configuration: dim1, dim2, dim3 = (200, 200, 100); 2 classes.
    dims = (200, 200, 100)
    n_classes = 2
    batch = 8
    in1, in2, in3 = 64, 48, 32   # small synthetic omics feature counts

    root = jax.random.PRNGKey(0)
    kp1, kp2, kp3, kpo, kx1, kx2, kx3 = jax.random.split(root, 7)

    params = {
        "block1": _make_block_params(kp1, in1, dims),
        "block2": _make_block_params(kp2, in2, dims),
        "block3": _make_block_params(kp3, in3, dims),
        "out": (
            _make_stage_params(jax.random.fold_in(kpo, 0), dims[2] * 3, 100),
            _make_stage_params(jax.random.fold_in(kpo, 1), 100, n_classes,
                               with_bn=False),
        ),
    }
    kparams = [jnp.asarray(a) for a in prepare_params(params, dims[2])]

    x1 = jax.random.normal(kx1, (batch, in1), jnp.float32)
    x2 = jax.random.normal(kx2, (batch, in2), jnp.float32)
    x3 = jax.random.normal(kx3, (batch, in3), jnp.float32)

    fwd = jax.jit(nn_concat_forward)
    logits = fwd(kparams, x1, x2, x3)
    jax.block_until_ready(logits)
    assert logits.shape == (batch, n_classes) and logits.dtype == jnp.float32

    ref = nn_concat_reference(params, x1, x2, x3)
    assert jnp.allclose(logits, ref, rtol=1e-3, atol=1e-3), (
        float(jnp.max(jnp.abs(logits - ref))))
    print("KERNEL_OK")
</pallas_src>

<mosaic_0001>
module attributes {stable_mosaic.version = 11 : i64} {
  func.func @_nn_concat_kernel(%arg0: i32, %arg1: memref<8x64xf32, #tpu.memory_space<vmem>>, %arg2: memref<8x48xf32, #tpu.memory_space<vmem>>, %arg3: memref<8x32xf32, #tpu.memory_space<vmem>>, %arg4: memref<64x200xf32, #tpu.memory_space<vmem>>, %arg5: memref<3x200xf32, #tpu.memory_space<vmem>>, %arg6: memref<200x200xf32, #tpu.memory_space<vmem>>, %arg7: memref<1x200xf32, #tpu.memory_space<vmem>>, %arg8: memref<200x100xf32, #tpu.memory_space<vmem>>, %arg9: memref<3x100xf32, #tpu.memory_space<vmem>>, %arg10: memref<48x200xf32, #tpu.memory_space<vmem>>, %arg11: memref<3x200xf32, #tpu.memory_space<vmem>>, %arg12: memref<200x200xf32, #tpu.memory_space<vmem>>, %arg13: memref<3x200xf32, #tpu.memory_space<vmem>>, %arg14: memref<200x100xf32, #tpu.memory_space<vmem>>, %arg15: memref<3x100xf32, #tpu.memory_space<vmem>>, %arg16: memref<32x200xf32, #tpu.memory_space<vmem>>, %arg17: memref<3x200xf32, #tpu.memory_space<vmem>>, %arg18: memref<200x200xf32, #tpu.memory_space<vmem>>, %arg19: memref<3x200xf32, #tpu.memory_space<vmem>>, %arg20: memref<200x100xf32, #tpu.memory_space<vmem>>, %arg21: memref<3x100xf32, #tpu.memory_space<vmem>>, %arg22: memref<100x100xf32, #tpu.memory_space<vmem>>, %arg23: memref<100x100xf32, #tpu.memory_space<vmem>>, %arg24: memref<100x100xf32, #tpu.memory_space<vmem>>, %arg25: memref<3x100xf32, #tpu.memory_space<vmem>>, %arg26: memref<100x2xf32, #tpu.memory_space<vmem>>, %arg27: memref<1x2xf32, #tpu.memory_space<vmem>>, %arg28: memref<8x2xf32, #tpu.memory_space<vmem>>) attributes {dimension_semantics = [#tpu.dimension_semantics<parallel>], iteration_bounds = array<i64: 1>, scalar_prefetch = 0 : i64, scratch_operands = 0 : i64, tpu.core_type = #tpu.core_type<tc>, window_params = [{transform_indices = @transform_0, window_bounds = array<i64: 8, 64>}, {transform_indices = @transform_1, window_bounds = array<i64: 8, 48>}, {transform_indices = @transform_2, window_bounds = array<i64: 8, 32>}, {pipeline_mode = #tpu.pipeline_mode<synchronous>, transform_indices = @transform_3, window_bounds = array<i64: 64, 200>}, {pipeline_mode = #tpu.pipeline_mode<synchronous>, transform_indices = @transform_4, window_bounds = array<i64: 3, 200>}, {pipeline_mode = #tpu.pipeline_mode<synchronous>, transform_indices = @transform_5, window_bounds = array<i64: 200, 200>}, {pipeline_mode = #tpu.pipeline_mode<synchronous>, transform_indices = @transform_6, window_bounds = array<i64: 1, 200>}, {pipeline_mode = #tpu.pipeline_mode<synchronous>, transform_indices = @transform_7, window_bounds = array<i64: 200, 100>}, {pipeline_mode = #tpu.pipeline_mode<synchronous>, transform_indices = @transform_8, window_bounds = array<i64: 3, 100>}, {pipeline_mode = #tpu.pipeline_mode<synchronous>, transform_indices = @transform_9, window_bounds = array<i64: 48, 200>}, {pipeline_mode = #tpu.pipeline_mode<synchronous>, transform_indices = @transform_10, window_bounds = array<i64: 3, 200>}, {pipeline_mode = #tpu.pipeline_mode<synchronous>, transform_indices = @transform_11, window_bounds = array<i64: 200, 200>}, {pipeline_mode = #tpu.pipeline_mode<synchronous>, transform_indices = @transform_12, window_bounds = array<i64: 3, 200>}, {pipeline_mode = #tpu.pipeline_mode<synchronous>, transform_indices = @transform_13, window_bounds = array<i64: 200, 100>}, {pipeline_mode = #tpu.pipeline_mode<synchronous>, transform_indices = @transform_14, window_bounds = array<i64: 3, 100>}, {pipeline_mode = #tpu.pipeline_mode<synchronous>, transform_indices = @transform_15, window_bounds = array<i64: 32, 200>}, {pipeline_mode = #tpu.pipeline_mode<synchronous>, transform_indices = @transform_16, window_bounds = array<i64: 3, 200>}, {pipeline_mode = #tpu.pipeline_mode<synchronous>, transform_indices = @transform_17, window_bounds = array<i64: 200, 200>}, {pipeline_mode = #tpu.pipeline_mode<synchronous>, transform_indices = @transform_18, window_bounds = array<i64: 3, 200>}, {pipeline_mode = #tpu.pipeline_mode<synchronous>, transform_indices = @transform_19, window_bounds = array<i64: 200, 100>}, {pipeline_mode = #tpu.pipeline_mode<synchronous>, transform_indices = @transform_20, window_bounds = array<i64: 3, 100>}, {pipeline_mode = #tpu.pipeline_mode<synchronous>, transform_indices = @transform_21, window_bounds = array<i64: 100, 100>}, {pipeline_mode = #tpu.pipeline_mode<synchronous>, transform_indices = @transform_22, window_bounds = array<i64: 100, 100>}, {pipeline_mode = #tpu.pipeline_mode<synchronous>, transform_indices = @transform_23, window_bounds = array<i64: 100, 100>}, {pipeline_mode = #tpu.pipeline_mode<synchronous>, transform_indices = @transform_24, window_bounds = array<i64: 3, 100>}, {pipeline_mode = #tpu.pipeline_mode<synchronous>, transform_indices = @transform_25, window_bounds = array<i64: 100, 2>}, {pipeline_mode = #tpu.pipeline_mode<synchronous>, transform_indices = @transform_26, window_bounds = array<i64: 1, 2>}, {transform_indices = @transform_27, window_bounds = array<i64: 8, 2>}]} {
    %c0 = arith.constant 0 : index
    %c0_0 = arith.constant 0 : index
    %0 = vector.load %arg1[%c0, %c0_0] : memref<8x64xf32, #tpu.memory_space<vmem>>, vector<8x64xf32>
    %c0_1 = arith.constant 0 : index
    %c0_2 = arith.constant 0 : index
    %1 = vector.load %arg4[%c0_1, %c0_2] : memref<64x200xf32, #tpu.memory_space<vmem>>, vector<64x200xf32>
    %cst = arith.constant dense<0.000000e+00> : vector<8x200xf32>
    %2 = tpu.matmul %0, %1, %cst {dimension_numbers = #tpu.dot_dimension_numbers<[1], [0], [0], [1], [0, 0, 1, 1], [], []>} : vector<8x64xf32>, vector<64x200xf32>, vector<8x200xf32> -> vector<8x200xf32>
    %c0_3 = arith.constant 0 : index
    %c0_4 = arith.constant 0 : index
    %3 = vector.load %arg5[%c0_3, %c0_4] : memref<3x200xf32, #tpu.memory_space<vmem>>, vector<3x200xf32>
    %4 = vector.extract_strided_slice %3 {offsets = [0, 0], sizes = [1, 200], strides = [1, 1]} : vector<3x200xf32> to vector<1x200xf32>
    %5 = vector.broadcast %4 : vector<1x200xf32> to vector<8x200xf32>
    %6 = arith.addf %2, %5 : vector<8x200xf32>
    %cst_5 = arith.constant 0.000000e+00 : f32
    %7 = vector.broadcast %cst_5 : f32 to vector<8x200xf32>
    %8 = arith.cmpf oge, %6, %7 : vector<8x200xf32>
    %cst_6 = arith.constant 2.500000e-01 : f32
    %9 = vector.broadcast %cst_6 : f32 to vector<8x200xf32>
    %10 = arith.mulf %9, %6 : vector<8x200xf32>
    %11 = arith.select %8, %6, %10 : vector<8x200xi1>, vector<8x200xf32>
    %12 = vector.extract_strided_slice %3 {offsets = [1, 0], sizes = [1, 200], strides = [1, 1]} : vector<3x200xf32> to vector<1x200xf32>
    %13 = vector.broadcast %12 : vector<1x200xf32> to vector<8x200xf32>
    %14 = arith.mulf %11, %13 : vector<8x200xf32>
    %15 = vector.extract_strided_slice %3 {offsets = [2, 0], sizes = [1, 200], strides = [1, 1]} : vector<3x200xf32> to vector<1x200xf32>
    %16 = vector.broadcast %15 : vector<1x200xf32> to vector<8x200xf32>
    %17 = arith.addf %14, %16 : vector<8x200xf32>
    %c0_7 = arith.constant 0 : index
    %c0_8 = arith.constant 0 : index
    %18 = vector.load %arg6[%c0_7, %c0_8] : memref<200x200xf32, #tpu.memory_space<vmem>>, vector<200x200xf32>
    %cst_9 = arith.constant dense<0.000000e+00> : vector<8x200xf32>
    %19 = tpu.matmul %17, %18, %cst_9 {dimension_numbers = #tpu.dot_dimension_numbers<[1], [0], [0], [1], [0, 0, 1, 1], [], []>} : vector<8x200xf32>, vector<200x200xf32>, vector<8x200xf32> -> vector<8x200xf32>
    %c0_10 = arith.constant 0 : index
    %c0_11 = arith.constant 0 : index
    %20 = vector.load %arg7[%c0_10, %c0_11] : memref<1x200xf32, #tpu.memory_space<vmem>>, vector<1x200xf32>
    %21 = vector.broadcast %20 : vector<1x200xf32> to vector<8x200xf32>
    %22 = arith.addf %19, %21 : vector<8x200xf32>
    %c0_12 = arith.constant 0 : index
    %c0_13 = arith.constant 0 : index
    %23 = vector.load %arg8[%c0_12, %c0_13] : memref<200x100xf32, #tpu.memory_space<vmem>>, vector<200x100xf32>
    %cst_14 = arith.constant dense<0.000000e+00> : vector<8x100xf32>
    %24 = tpu.matmul %22, %23, %cst_14 {dimension_numbers = #tpu.dot_dimension_numbers<[1], [0], [0], [1], [0, 0, 1, 1], [], []>} : vector<8x200xf32>, vector<200x100xf32>, vector<8x100xf32> -> vector<8x100xf32>
    %c0_15 = arith.constant 0 : index
    %c0_16 = arith.constant 0 : index
    %25 = vector.load %arg9[%c0_15, %c0_16] : memref<3x100xf32, #tpu.memory_space<vmem>>, vector<3x100xf32>
    %26 = vector.extract_strided_slice %25 {offsets = [0, 0], sizes = [1, 100], strides = [1, 1]} : vector<3x100xf32> to vector<1x100xf32>
    %27 = vector.broadcast %26 : vector<1x100xf32> to vector<8x100xf32>
    %28 = arith.addf %24, %27 : vector<8x100xf32>
    %cst_17 = arith.constant 0.000000e+00 : f32
    %29 = vector.broadcast %cst_17 : f32 to vector<8x100xf32>
    %30 = arith.cmpf oge, %28, %29 : vector<8x100xf32>
    %cst_18 = arith.constant 2.500000e-01 : f32
    %31 = vector.broadcast %cst_18 : f32 to vector<8x100xf32>
    %32 = arith.mulf %31, %28 : vector<8x100xf32>
    %33 = arith.select %30, %28, %32 : vector<8x100xi1>, vector<8x100xf32>
    %34 = vector.extract_strided_slice %25 {offsets = [1, 0], sizes = [1, 100], strides = [1, 1]} : vector<3x100xf32> to vector<1x100xf32>
    %35 = vector.broadcast %34 : vector<1x100xf32> to vector<8x100xf32>
    %36 = arith.mulf %33, %35 : vector<8x100xf32>
    %37 = vector.extract_strided_slice %25 {offsets = [2, 0], sizes = [1, 100], strides = [1, 1]} : vector<3x100xf32> to vector<1x100xf32>
    %38 = vector.broadcast %37 : vector<1x100xf32> to vector<8x100xf32>
    %39 = arith.addf %36, %38 : vector<8x100xf32>
    %c0_19 = arith.constant 0 : index
    %c0_20 = arith.constant 0 : index
    %40 = vector.load %arg2[%c0_19, %c0_20] : memref<8x48xf32, #tpu.memory_space<vmem>>, vector<8x48xf32>
    %c0_21 = arith.constant 0 : index
    %c0_22 = arith.constant 0 : index
    %41 = vector.load %arg10[%c0_21, %c0_22] : memref<48x200xf32, #tpu.memory_space<vmem>>, vector<48x200xf32>
    %cst_23 = arith.constant dense<0.000000e+00> : vector<8x200xf32>
    %42 = tpu.matmul %40, %41, %cst_23 {dimension_numbers = #tpu.dot_dimension_numbers<[1], [0], [0], [1], [0, 0, 1, 1], [], []>} : vector<8x48xf32>, vector<48x200xf32>, vector<8x200xf32> -> vector<8x200xf32>
    %c0_24 = arith.constant 0 : index
    %c0_25 = arith.constant 0 : index
    %43 = vector.load %arg11[%c0_24, %c0_25] : memref<3x200xf32, #tpu.memory_space<vmem>>, vector<3x200xf32>
    %44 = vector.extract_strided_slice %43 {offsets = [0, 0], sizes = [1, 200], strides = [1, 1]} : vector<3x200xf32> to vector<1x200xf32>
    %45 = vector.broadcast %44 : vector<1x200xf32> to vector<8x200xf32>
    %46 = arith.addf %42, %45 : vector<8x200xf32>
    %cst_26 = arith.constant 0.000000e+00 : f32
    %47 = vector.broadcast %cst_26 : f32 to vector<8x200xf32>
    %48 = arith.cmpf oge, %46, %47 : vector<8x200xf32>
    %cst_27 = arith.constant 2.500000e-01 : f32
    %49 = vector.broadcast %cst_27 : f32 to vector<8x200xf32>
    %50 = arith.mulf %49, %46 : vector<8x200xf32>
    %51 = arith.select %48, %46, %50 : vector<8x200xi1>, vector<8x200xf32>
    %52 = vector.extract_strided_slice %43 {offsets = [1, 0], sizes = [1, 200], strides = [1, 1]} : vector<3x200xf32> to vector<1x200xf32>
    %53 = vector.broadcast %52 : vector<1x200xf32> to vector<8x200xf32>
    %54 = arith.mulf %51, %53 : vector<8x200xf32>
    %55 = vector.extract_strided_slice %43 {offsets = [2, 0], sizes = [1, 200], strides = [1, 1]} : vector<3x200xf32> to vector<1x200xf32>
    %56 = vector.broadcast %55 : vector<1x200xf32> to vector<8x200xf32>
    %57 = arith.addf %54, %56 : vector<8x200xf32>
    %c0_28 = arith.constant 0 : index
    %c0_29 = arith.constant 0 : index
    %58 = vector.load %arg12[%c0_28, %c0_29] : memref<200x200xf32, #tpu.memory_space<vmem>>, vector<200x200xf32>
    %cst_30 = arith.constant dense<0.000000e+00> : vector<8x200xf32>
    %59 = tpu.matmul %57, %58, %cst_30 {dimension_numbers = #tpu.dot_dimension_numbers<[1], [0], [0], [1], [0, 0, 1, 1], [], []>} : vector<8x200xf32>, vector<200x200xf32>, vector<8x200xf32> -> vector<8x200xf32>
    %c0_31 = arith.constant 0 : index
    %c0_32 = arith.constant 0 : index
    %60 = vector.load %arg13[%c0_31, %c0_32] : memref<3x200xf32, #tpu.memory_space<vmem>>, vector<3x200xf32>
    %61 = vector.extract_strided_slice %60 {offsets = [0, 0], sizes = [1, 200], strides = [1, 1]} : vector<3x200xf32> to vector<1x200xf32>
    %62 = vector.broadcast %61 : vector<1x200xf32> to vector<8x200xf32>
    %63 = arith.addf %59, %62 : vector<8x200xf32>
    %cst_33 = arith.constant 0.000000e+00 : f32
    %64 = vector.broadcast %cst_33 : f32 to vector<8x200xf32>
    %65 = arith.cmpf oge, %63, %64 : vector<8x200xf32>
    %cst_34 = arith.constant 2.500000e-01 : f32
    %66 = vector.broadcast %cst_34 : f32 to vector<8x200xf32>
    %67 = arith.mulf %66, %63 : vector<8x200xf32>
    %68 = arith.select %65, %63, %67 : vector<8x200xi1>, vector<8x200xf32>
    %69 = vector.extract_strided_slice %60 {offsets = [1, 0], sizes = [1, 200], strides = [1, 1]} : vector<3x200xf32> to vector<1x200xf32>
    %70 = vector.broadcast %69 : vector<1x200xf32> to vector<8x200xf32>
    %71 = arith.mulf %68, %70 : vector<8x200xf32>
    %72 = vector.extract_strided_slice %60 {offsets = [2, 0], sizes = [1, 200], strides = [1, 1]} : vector<3x200xf32> to vector<1x200xf32>
    %73 = vector.broadcast %72 : vector<1x200xf32> to vector<8x200xf32>
    %74 = arith.addf %71, %73 : vector<8x200xf32>
    %c0_35 = arith.constant 0 : index
    %c0_36 = arith.constant 0 : index
    %75 = vector.load %arg14[%c0_35, %c0_36] : memref<200x100xf32, #tpu.memory_space<vmem>>, vector<200x100xf32>
    %cst_37 = arith.constant dense<0.000000e+00> : vector<8x100xf32>
    %76 = tpu.matmul %74, %75, %cst_37 {dimension_numbers = #tpu.dot_dimension_numbers<[1], [0], [0], [1], [0, 0, 1, 1], [], []>} : vector<8x200xf32>, vector<200x100xf32>, vector<8x100xf32> -> vector<8x100xf32>
    %c0_38 = arith.constant 0 : index
    %c0_39 = arith.constant 0 : index
    %77 = vector.load %arg15[%c0_38, %c0_39] : memref<3x100xf32, #tpu.memory_space<vmem>>, vector<3x100xf32>
    %78 = vector.extract_strided_slice %77 {offsets = [0, 0], sizes = [1, 100], strides = [1, 1]} : vector<3x100xf32> to vector<1x100xf32>
    %79 = vector.broadcast %78 : vector<1x100xf32> to vector<8x100xf32>
    %80 = arith.addf %76, %79 : vector<8x100xf32>
    %cst_40 = arith.constant 0.000000e+00 : f32
    %81 = vector.broadcast %cst_40 : f32 to vector<8x100xf32>
    %82 = arith.cmpf oge, %80, %81 : vector<8x100xf32>
    %cst_41 = arith.constant 2.500000e-01 : f32
    %83 = vector.broadcast %cst_41 : f32 to vector<8x100xf32>
    %84 = arith.mulf %83, %80 : vector<8x100xf32>
    %85 = arith.select %82, %80, %84 : vector<8x100xi1>, vector<8x100xf32>
    %86 = vector.extract_strided_slice %77 {offsets = [1, 0], sizes = [1, 100], strides = [1, 1]} : vector<3x100xf32> to vector<1x100xf32>
    %87 = vector.broadcast %86 : vector<1x100xf32> to vector<8x100xf32>
    %88 = arith.mulf %85, %87 : vector<8x100xf32>
    %89 = vector.extract_strided_slice %77 {offsets = [2, 0], sizes = [1, 100], strides = [1, 1]} : vector<3x100xf32> to vector<1x100xf32>
    %90 = vector.broadcast %89 : vector<1x100xf32> to vector<8x100xf32>
    %91 = arith.addf %88, %90 : vector<8x100xf32>
    %c0_42 = arith.constant 0 : index
    %c0_43 = arith.constant 0 : index
    %92 = vector.load %arg3[%c0_42, %c0_43] : memref<8x32xf32, #tpu.memory_space<vmem>>, vector<8x32xf32>
    %c0_44 = arith.constant 0 : index
    %c0_45 = arith.constant 0 : index
    %93 = vector.load %arg16[%c0_44, %c0_45] : memref<32x200xf32, #tpu.memory_space<vmem>>, vector<32x200xf32>
    %cst_46 = arith.constant dense<0.000000e+00> : vector<8x200xf32>
    %94 = tpu.matmul %92, %93, %cst_46 {dimension_numbers = #tpu.dot_dimension_numbers<[1], [0], [0], [1], [0, 0, 1, 1], [], []>} : vector<8x32xf32>, vector<32x200xf32>, vector<8x200xf32> -> vector<8x200xf32>
    %c0_47 = arith.constant 0 : index
    %c0_48 = arith.constant 0 : index
    %95 = vector.load %arg17[%c0_47, %c0_48] : memref<3x200xf32, #tpu.memory_space<vmem>>, vector<3x200xf32>
    %96 = vector.extract_strided_slice %95 {offsets = [0, 0], sizes = [1, 200], strides = [1, 1]} : vector<3x200xf32> to vector<1x200xf32>
    %97 = vector.broadcast %96 : vector<1x200xf32> to vector<8x200xf32>
    %98 = arith.addf %94, %97 : vector<8x200xf32>
    %cst_49 = arith.constant 0.000000e+00 : f32
    %99 = vector.broadcast %cst_49 : f32 to vector<8x200xf32>
    %100 = arith.cmpf oge, %98, %99 : vector<8x200xf32>
    %cst_50 = arith.constant 2.500000e-01 : f32
    %101 = vector.broadcast %cst_50 : f32 to vector<8x200xf32>
    %102 = arith.mulf %101, %98 : vector<8x200xf32>
    %103 = arith.select %100, %98, %102 : vector<8x200xi1>, vector<8x200xf32>
    %104 = vector.extract_strided_slice %95 {offsets = [1, 0], sizes = [1, 200], strides = [1, 1]} : vector<3x200xf32> to vector<1x200xf32>
    %105 = vector.broadcast %104 : vector<1x200xf32> to vector<8x200xf32>
    %106 = arith.mulf %103, %105 : vector<8x200xf32>
    %107 = vector.extract_strided_slice %95 {offsets = [2, 0], sizes = [1, 200], strides = [1, 1]} : vector<3x200xf32> to vector<1x200xf32>
    %108 = vector.broadcast %107 : vector<1x200xf32> to vector<8x200xf32>
    %109 = arith.addf %106, %108 : vector<8x200xf32>
    %c0_51 = arith.constant 0 : index
    %c0_52 = arith.constant 0 : index
    %110 = vector.load %arg18[%c0_51, %c0_52] : memref<200x200xf32, #tpu.memory_space<vmem>>, vector<200x200xf32>
    %cst_53 = arith.constant dense<0.000000e+00> : vector<8x200xf32>
    %111 = tpu.matmul %109, %110, %cst_53 {dimension_numbers = #tpu.dot_dimension_numbers<[1], [0], [0], [1], [0, 0, 1, 1], [], []>} : vector<8x200xf32>, vector<200x200xf32>, vector<8x200xf32> -> vector<8x200xf32>
    %c0_54 = arith.constant 0 : index
    %c0_55 = arith.constant 0 : index
    %112 = vector.load %arg19[%c0_54, %c0_55] : memref<3x200xf32, #tpu.memory_space<vmem>>, vector<3x200xf32>
    %113 = vector.extract_strided_slice %112 {offsets = [0, 0], sizes = [1, 200], strides = [1, 1]} : vector<3x200xf32> to vector<1x200xf32>
    %114 = vector.broadcast %113 : vector<1x200xf32> to vector<8x200xf32>
    %115 = arith.addf %111, %114 : vector<8x200xf32>
    %cst_56 = arith.constant 0.000000e+00 : f32
    %116 = vector.broadcast %cst_56 : f32 to vector<8x200xf32>
    %117 = arith.cmpf oge, %115, %116 : vector<8x200xf32>
    %cst_57 = arith.constant 2.500000e-01 : f32
    %118 = vector.broadcast %cst_57 : f32 to vector<8x200xf32>
    %119 = arith.mulf %118, %115 : vector<8x200xf32>
    %120 = arith.select %117, %115, %119 : vector<8x200xi1>, vector<8x200xf32>
    %121 = vector.extract_strided_slice %112 {offsets = [1, 0], sizes = [1, 200], strides = [1, 1]} : vector<3x200xf32> to vector<1x200xf32>
    %122 = vector.broadcast %121 : vector<1x200xf32> to vector<8x200xf32>
    %123 = arith.mulf %120, %122 : vector<8x200xf32>
    %124 = vector.extract_strided_slice %112 {offsets = [2, 0], sizes = [1, 200], strides = [1, 1]} : vector<3x200xf32> to vector<1x200xf32>
    %125 = vector.broadcast %124 : vector<1x200xf32> to vector<8x200xf32>
    %126 = arith.addf %123, %125 : vector<8x200xf32>
    %c0_58 = arith.constant 0 : index
    %c0_59 = arith.constant 0 : index
    %127 = vector.load %arg20[%c0_58, %c0_59] : memref<200x100xf32, #tpu.memory_space<vmem>>, vector<200x100xf32>
    %cst_60 = arith.constant dense<0.000000e+00> : vector<8x100xf32>
    %128 = tpu.matmul %126, %127, %cst_60 {dimension_numbers = #tpu.dot_dimension_numbers<[1], [0], [0], [1], [0, 0, 1, 1], [], []>} : vector<8x200xf32>, vector<200x100xf32>, vector<8x100xf32> -> vector<8x100xf32>
    %c0_61 = arith.constant 0 : index
    %c0_62 = arith.constant 0 : index
    %129 = vector.load %arg21[%c0_61, %c0_62] : memref<3x100xf32, #tpu.memory_space<vmem>>, vector<3x100xf32>
    %130 = vector.extract_strided_slice %129 {offsets = [0, 0], sizes = [1, 100], strides = [1, 1]} : vector<3x100xf32> to vector<1x100xf32>
    %131 = vector.broadcast %130 : vector<1x100xf32> to vector<8x100xf32>
    %132 = arith.addf %128, %131 : vector<8x100xf32>
    %cst_63 = arith.constant 0.000000e+00 : f32
    %133 = vector.broadcast %cst_63 : f32 to vector<8x100xf32>
    %134 = arith.cmpf oge, %132, %133 : vector<8x100xf32>
    %cst_64 = arith.constant 2.500000e-01 : f32
    %135 = vector.broadcast %cst_64 : f32 to vector<8x100xf32>
    %136 = arith.mulf %135, %132 : vector<8x100xf32>
    %137 = arith.select %134, %132, %136 : vector<8x100xi1>, vector<8x100xf32>
    %138 = vector.extract_strided_slice %129 {offsets = [1, 0], sizes = [1, 100], strides = [1, 1]} : vector<3x100xf32> to vector<1x100xf32>
    %139 = vector.broadcast %138 : vector<1x100xf32> to vector<8x100xf32>
    %140 = arith.mulf %137, %139 : vector<8x100xf32>
    %141 = vector.extract_strided_slice %129 {offsets = [2, 0], sizes = [1, 100], strides = [1, 1]} : vector<3x100xf32> to vector<1x100xf32>
    %142 = vector.broadcast %141 : vector<1x100xf32> to vector<8x100xf32>
    %143 = arith.addf %140, %142 : vector<8x100xf32>
    %c0_65 = arith.constant 0 : index
    %c0_66 = arith.constant 0 : index
    %144 = vector.load %arg22[%c0_65, %c0_66] : memref<100x100xf32, #tpu.memory_space<vmem>>, vector<100x100xf32>
    %cst_67 = arith.constant dense<0.000000e+00> : vector<8x100xf32>
    %145 = tpu.matmul %39, %144, %cst_67 {dimension_numbers = #tpu.dot_dimension_numbers<[1], [0], [0], [1], [0, 0, 1, 1], [], []>} : vector<8x100xf32>, vector<100x100xf32>, vector<8x100xf32> -> vector<8x100xf32>
    %c0_68 = arith.constant 0 : index
    %c0_69 = arith.constant 0 : index
    %146 = vector.load %arg23[%c0_68, %c0_69] : memref<100x100xf32, #tpu.memory_space<vmem>>, vector<100x100xf32>
    %cst_70 = arith.constant dense<0.000000e+00> : vector<8x100xf32>
    %147 = tpu.matmul %91, %146, %cst_70 {dimension_numbers = #tpu.dot_dimension_numbers<[1], [0], [0], [1], [0, 0, 1, 1], [], []>} : vector<8x100xf32>, vector<100x100xf32>, vector<8x100xf32> -> vector<8x100xf32>
    %148 = arith.addf %145, %147 : vector<8x100xf32>
    %c0_71 = arith.constant 0 : index
    %c0_72 = arith.constant 0 : index
    %149 = vector.load %arg24[%c0_71, %c0_72] : memref<100x100xf32, #tpu.memory_space<vmem>>, vector<100x100xf32>
    %cst_73 = arith.constant dense<0.000000e+00> : vector<8x100xf32>
    %150 = tpu.matmul %143, %149, %cst_73 {dimension_numbers = #tpu.dot_dimension_numbers<[1], [0], [0], [1], [0, 0, 1, 1], [], []>} : vector<8x100xf32>, vector<100x100xf32>, vector<8x100xf32> -> vector<8x100xf32>
    %151 = arith.addf %148, %150 : vector<8x100xf32>
    %c0_74 = arith.constant 0 : index
    %c0_75 = arith.constant 0 : index
    %152 = vector.load %arg25[%c0_74, %c0_75] : memref<3x100xf32, #tpu.memory_space<vmem>>, vector<3x100xf32>
    %153 = vector.extract_strided_slice %152 {offsets = [0, 0], sizes = [1, 100], strides = [1, 1]} : vector<3x100xf32> to vector<1x100xf32>
    %154 = vector.broadcast %153 : vector<1x100xf32> to vector<8x100xf32>
    %155 = arith.addf %151, %154 : vector<8x100xf32>
    %cst_76 = arith.constant 0.000000e+00 : f32
    %156 = vector.broadcast %cst_76 : f32 to vector<8x100xf32>
    %157 = arith.cmpf oge, %155, %156 : vector<8x100xf32>
    %cst_77 = arith.constant 2.500000e-01 : f32
    %158 = vector.broadcast %cst_77 : f32 to vector<8x100xf32>
    %159 = arith.mulf %158, %155 : vector<8x100xf32>
    %160 = arith.select %157, %155, %159 : vector<8x100xi1>, vector<8x100xf32>
    %161 = vector.extract_strided_slice %152 {offsets = [1, 0], sizes = [1, 100], strides = [1, 1]} : vector<3x100xf32> to vector<1x100xf32>
    %162 = vector.broadcast %161 : vector<1x100xf32> to vector<8x100xf32>
    %163 = arith.mulf %160, %162 : vector<8x100xf32>
    %164 = vector.extract_strided_slice %152 {offsets = [2, 0], sizes = [1, 100], strides = [1, 1]} : vector<3x100xf32> to vector<1x100xf32>
    %165 = vector.broadcast %164 : vector<1x100xf32> to vector<8x100xf32>
    %166 = arith.addf %163, %165 : vector<8x100xf32>
    %c0_78 = arith.constant 0 : index
    %c0_79 = arith.constant 0 : index
    %167 = vector.load %arg26[%c0_78, %c0_79] : memref<100x2xf32, #tpu.memory_space<vmem>>, vector<100x2xf32>
    %cst_80 = arith.constant dense<0.000000e+00> : vector<8x2xf32>
    %168 = tpu.matmul %166, %167, %cst_80 {dimension_numbers = #tpu.dot_dimension_numbers<[1], [0], [0], [1], [0, 0, 1, 1], [], []>} : vector<8x100xf32>, vector<100x2xf32>, vector<8x2xf32> -> vector<8x2xf32>
    %c0_81 = arith.constant 0 : index
    %c0_82 = arith.constant 0 : index
    %169 = vector.load %arg27[%c0_81, %c0_82] : memref<1x2xf32, #tpu.memory_space<vmem>>, vector<1x2xf32>
    %170 = vector.broadcast %169 : vector<1x2xf32> to vector<8x2xf32>
    %171 = arith.addf %168, %170 : vector<8x2xf32>
    %c0_83 = arith.constant 0 : index
    %c0_84 = arith.constant 0 : index
    %172 = vector.load %arg28[%c0_83, %c0_84] : memref<8x2xf32, #tpu.memory_space<vmem>>, vector<8x2xf32>
    tpu.vector_store %arg28[%c0_83, %c0_84], %171 {strides = array<i32>} : memref<8x2xf32, #tpu.memory_space<vmem>>, vector<8x2xf32>,
    return
  }
  func.func @transform_0(%arg0: i32) -> (i32, i32) {
    %c0_i32 = arith.constant 0 : i32
    %c0_i32_0 = arith.constant 0 : i32
    return %arg0, %c0_i32 : i32, i32
  }
  func.func @transform_1(%arg0: i32) -> (i32, i32) {
    %c0_i32 = arith.constant 0 : i32
    %c0_i32_0 = arith.constant 0 : i32
    return %arg0, %c0_i32 : i32, i32
  }
  func.func @transform_2(%arg0: i32) -> (i32, i32) {
    %c0_i32 = arith.constant 0 : i32
    %c0_i32_0 = arith.constant 0 : i32
    return %arg0, %c0_i32 : i32, i32
  }
  func.func @transform_3(%arg0: i32) -> (i32, i32) {
    %c0_i32 = arith.constant 0 : i32
    %c0_i32_0 = arith.constant 0 : i32
    %c0_i32_1 = arith.constant 0 : i32
    return %c0_i32, %c0_i32_0 : i32, i32
  }
  func.func @transform_4(%arg0: i32) -> (i32, i32) {
    %c0_i32 = arith.constant 0 : i32
    %c0_i32_0 = arith.constant 0 : i32
    %c0_i32_1 = arith.constant 0 : i32
    return %c0_i32, %c0_i32_0 : i32, i32
  }
  func.func @transform_5(%arg0: i32) -> (i32, i32) {
    %c0_i32 = arith.constant 0 : i32
    %c0_i32_0 = arith.constant 0 : i32
    %c0_i32_1 = arith.constant 0 : i32
    return %c0_i32, %c0_i32_0 : i32, i32
  }
  func.func @transform_6(%arg0: i32) -> (i32, i32) {
    %c0_i32 = arith.constant 0 : i32
    %c0_i32_0 = arith.constant 0 : i32
    %c0_i32_1 = arith.constant 0 : i32
    return %c0_i32, %c0_i32_0 : i32, i32
  }
  func.func @transform_7(%arg0: i32) -> (i32, i32) {
    %c0_i32 = arith.constant 0 : i32
    %c0_i32_0 = arith.constant 0 : i32
    %c0_i32_1 = arith.constant 0 : i32
    return %c0_i32, %c0_i32_0 : i32, i32
  }
  func.func @transform_8(%arg0: i32) -> (i32, i32) {
    %c0_i32 = arith.constant 0 : i32
    %c0_i32_0 = arith.constant 0 : i32
    %c0_i32_1 = arith.constant 0 : i32
    return %c0_i32, %c0_i32_0 : i32, i32
  }
  func.func @transform_9(%arg0: i32) -> (i32, i32) {
    %c0_i32 = arith.constant 0 : i32
    %c0_i32_0 = arith.constant 0 : i32
    %c0_i32_1 = arith.constant 0 : i32
    return %c0_i32, %c0_i32_0 : i32, i32
  }
  func.func @transform_10(%arg0: i32) -> (i32, i32) {
    %c0_i32 = arith.constant 0 : i32
    %c0_i32_0 = arith.constant 0 : i32
    %c0_i32_1 = arith.constant 0 : i32
    return %c0_i32, %c0_i32_0 : i32, i32
  }
  func.func @transform_11(%arg0: i32) -> (i32, i32) {
    %c0_i32 = arith.constant 0 : i32
    %c0_i32_0 = arith.constant 0 : i32
    %c0_i32_1 = arith.constant 0 : i32
    return %c0_i32, %c0_i32_0 : i32, i32
  }
  func.func @transform_12(%arg0: i32) -> (i32, i32) {
    %c0_i32 = arith.constant 0 : i32
    %c0_i32_0 = arith.constant 0 : i32
    %c0_i32_1 = arith.constant 0 : i32
    return %c0_i32, %c0_i32_0 : i32, i32
  }
  func.func @transform_13(%arg0: i32) -> (i32, i32) {
    %c0_i32 = arith.constant 0 : i32
    %c0_i32_0 = arith.constant 0 : i32
    %c0_i32_1 = arith.constant 0 : i32
    return %c0_i32, %c0_i32_0 : i32, i32
  }
  func.func @transform_14(%arg0: i32) -> (i32, i32) {
    %c0_i32 = arith.constant 0 : i32
    %c0_i32_0 = arith.constant 0 : i32
    %c0_i32_1 = arith.constant 0 : i32
    return %c0_i32, %c0_i32_0 : i32, i32
  }
  func.func @transform_15(%arg0: i32) -> (i32, i32) {
    %c0_i32 = arith.constant 0 : i32
    %c0_i32_0 = arith.constant 0 : i32
    %c0_i32_1 = arith.constant 0 : i32
    return %c0_i32, %c0_i32_0 : i32, i32
  }
  func.func @transform_16(%arg0: i32) -> (i32, i32) {
    %c0_i32 = arith.constant 0 : i32
    %c0_i32_0 = arith.constant 0 : i32
    %c0_i32_1 = arith.constant 0 : i32
    return %c0_i32, %c0_i32_0 : i32, i32
  }
  func.func @transform_17(%arg0: i32) -> (i32, i32) {
    %c0_i32 = arith.constant 0 : i32
    %c0_i32_0 = arith.constant 0 : i32
    %c0_i32_1 = arith.constant 0 : i32
    return %c0_i32, %c0_i32_0 : i32, i32
  }
  func.func @transform_18(%arg0: i32) -> (i32, i32) {
    %c0_i32 = arith.constant 0 : i32
    %c0_i32_0 = arith.constant 0 : i32
    %c0_i32_1 = arith.constant 0 : i32
    return %c0_i32, %c0_i32_0 : i32, i32
  }
  func.func @transform_19(%arg0: i32) -> (i32, i32) {
    %c0_i32 = arith.constant 0 : i32
    %c0_i32_0 = arith.constant 0 : i32
    %c0_i32_1 = arith.constant 0 : i32
    return %c0_i32, %c0_i32_0 : i32, i32
  }
  func.func @transform_20(%arg0: i32) -> (i32, i32) {
    %c0_i32 = arith.constant 0 : i32
    %c0_i32_0 = arith.constant 0 : i32
    %c0_i32_1 = arith.constant 0 : i32
    return %c0_i32, %c0_i32_0 : i32, i32
  }
  func.func @transform_21(%arg0: i32) -> (i32, i32) {
    %c0_i32 = arith.constant 0 : i32
    %c0_i32_0 = arith.constant 0 : i32
    %c0_i32_1 = arith.constant 0 : i32
    return %c0_i32, %c0_i32_0 : i32, i32
  }
  func.func @transform_22(%arg0: i32) -> (i32, i32) {
    %c0_i32 = arith.constant 0 : i32
    %c0_i32_0 = arith.constant 0 : i32
    %c0_i32_1 = arith.constant 0 : i32
    return %c0_i32, %c0_i32_0 : i32, i32
  }
  func.func @transform_23(%arg0: i32) -> (i32, i32) {
    %c0_i32 = arith.constant 0 : i32
    %c0_i32_0 = arith.constant 0 : i32
    %c0_i32_1 = arith.constant 0 : i32
    return %c0_i32, %c0_i32_0 : i32, i32
  }
  func.func @transform_24(%arg0: i32) -> (i32, i32) {
    %c0_i32 = arith.constant 0 : i32
    %c0_i32_0 = arith.constant 0 : i32
    %c0_i32_1 = arith.constant 0 : i32
    return %c0_i32, %c0_i32_0 : i32, i32
  }
  func.func @transform_25(%arg0: i32) -> (i32, i32) {
    %c0_i32 = arith.constant 0 : i32
    %c0_i32_0 = arith.constant 0 : i32
    %c0_i32_1 = arith.constant 0 : i32
    return %c0_i32, %c0_i32_0 : i32, i32
  }
  func.func @transform_26(%arg0: i32) -> (i32, i32) {
    %c0_i32 = arith.constant 0 : i32
    %c0_i32_0 = arith.constant 0 : i32
    %c0_i32_1 = arith.constant 0 : i32
    return %c0_i32, %c0_i32_0 : i32, i32
  }
  func.func @transform_27(%arg0: i32) -> (i32, i32) {
    %c0_i32 = arith.constant 0 : i32
    %c0_i32_0 = arith.constant 0 : i32
    return %arg0, %c0_i32 : i32, i32
  }
}

</mosaic_0001>

<llo_original>
// kernel: nn_concat_forward.1
$region0: #{nn_concat_forward.1}
  #allocation0 [shape = 'u32[]', space=smem, size = 0x4, offset = 0x4, fixed_abs, tag = 'smem constant byte address 0x4 - core index']
  #allocation1 [shape = 'u32[144,128]{1,0:T(1,128)}', space=vmem, size = 0x12000, scoped, tag = 'internal scratch']
  %s0 = inlined_call_operand.vmem [shape: f32[8,64], index: 0, kind: input, shape index: {}]
  %s1 = inlined_call_operand.vmem [shape: f32[8,48], index: 1, kind: input, shape index: {}]
  %s2 = inlined_call_operand.vmem [shape: f32[8,32], index: 2, kind: input, shape index: {}]
  %s3 = inlined_call_operand.hbm [shape: f32[64,200], index: 3, kind: input, shape index: {}]
  %s4 = inlined_call_operand.hbm [shape: f32[3,200], index: 4, kind: input, shape index: {}]
  %s5 = inlined_call_operand.hbm [shape: f32[200,200], index: 5, kind: input, shape index: {}]
  %s6 = inlined_call_operand.hbm [shape: f32[1,200], index: 6, kind: input, shape index: {}]
  %s7 = inlined_call_operand.hbm [shape: f32[200,100], index: 7, kind: input, shape index: {}]
  %s8 = inlined_call_operand.hbm [shape: f32[3,100], index: 8, kind: input, shape index: {}]
  %s9 = inlined_call_operand.hbm [shape: f32[48,200], index: 9, kind: input, shape index: {}]
  %s10 = inlined_call_operand.hbm [shape: f32[3,200], index: 10, kind: input, shape index: {}]
  %s11 = inlined_call_operand.hbm [shape: f32[200,200], index: 11, kind: input, shape index: {}]
  %s12 = inlined_call_operand.hbm [shape: f32[3,200], index: 12, kind: input, shape index: {}]
  %s13 = inlined_call_operand.hbm [shape: f32[200,100], index: 13, kind: input, shape index: {}]
  %s14 = inlined_call_operand.hbm [shape: f32[3,100], index: 14, kind: input, shape index: {}]
  %s15 = inlined_call_operand.vmem [shape: f32[32,200], index: 15, kind: input, shape index: {}]
  %s16 = inlined_call_operand.hbm [shape: f32[3,200], index: 16, kind: input, shape index: {}]
  %s17 = inlined_call_operand.hbm [shape: f32[200,200], index: 17, kind: input, shape index: {}]
  %s18 = inlined_call_operand.hbm [shape: f32[3,200], index: 18, kind: input, shape index: {}]
  %s19 = inlined_call_operand.hbm [shape: f32[200,100], index: 19, kind: input, shape index: {}]
  %s20 = inlined_call_operand.hbm [shape: f32[3,100], index: 20, kind: input, shape index: {}]
  %s21 = inlined_call_operand.vmem [shape: f32[100,100], index: 21, kind: input, shape index: {}]
  %s22 = inlined_call_operand.hbm [shape: f32[100,100], index: 22, kind: input, shape index: {}]
  %s23 = inlined_call_operand.hbm [shape: f32[100,100], index: 23, kind: input, shape index: {}]
  %s24 = inlined_call_operand.hbm [shape: f32[3,100], index: 24, kind: input, shape index: {}]
  %s25 = inlined_call_operand.vmem [shape: f32[100,2], index: 25, kind: input, shape index: {}]
  %s26 = inlined_call_operand.vmem [shape: f32[1,2], index: 26, kind: input, shape index: {}]
  %s27 = inlined_call_operand.vmem [shape: f32[8,2], index: 27, kind: output, shape index: {}]
  %s28 = sld [smem:[#allocation0]]
  $region198: #{nn_concat_forward.1} parent=0
    _
  %s30 = ssub.s32 1, %s28
  %s31 = scalar_select 0, %s30, %s28
  $region1: #{nn_concat_forward.1} parent=0
    #allocation2 [shape = 'u8[65536]{0}', space=vmem, size = 0x10000, scoped, tag = 'input window, operand 3, single buffered']
    #allocation3 [shape = 's32[1]{0}', space=sflag, size = 0x4, scoped, tag = 'scoped memory for nn_concat_forward.1']
    #allocation4 [shape = 'u8[4096]{0}', space=vmem, size = 0x1000, scoped, tag = 'input window, operand 4, single buffered']
    #allocation5 [shape = 's32[1]{0}', space=sflag, size = 0x4, scoped, tag = 'scoped memory for nn_concat_forward.1']
    #allocation6 [shape = 'u8[204800]{0}', space=vmem, size = 0x32000, scoped, tag = 'input window, operand 5, single buffered']
    #allocation7 [shape = 'u8[1024]{0}', space=vmem, size = 0x400, scoped, tag = 'input window, operand 6, single buffered']
    #allocation8 [shape = 's32[1]{0}', space=sflag, size = 0x4, scoped, tag = 'scoped memory for nn_concat_forward.1']
    #allocation9 [shape = 'u8[102400]{0}', space=vmem, size = 0x19000, scoped, tag = 'input window, operand 7, single buffered']
    #allocation10 [shape = 'u8[2048]{0}', space=vmem, size = 0x800, scoped, tag = 'input window, operand 8, single buffered']
    #allocation11 [shape = 's32[1]{0}', space=sflag, size = 0x4, scoped, tag = 'scoped memory for nn_concat_forward.1']
    #allocation12 [shape = 'u8[49152]{0}', space=vmem, size = 0xc000, scoped, tag = 'input window, operand 9, single buffered']
    #allocation13 [shape = 'u8[4096]{0}', space=vmem, size = 0x1000, scoped, tag = 'input window, operand 10, single buffered']
    #allocation14 [shape = 's32[1]{0}', space=sflag, size = 0x4, scoped, tag = 'scoped memory for nn_concat_forward.1']
    #allocation15 [shape = 'u8[204800]{0}', space=vmem, size = 0x32000, scoped, tag = 'input window, operand 11, single buffered']
    #allocation16 [shape = 'u8[4096]{0}', space=vmem, size = 0x1000, scoped, tag = 'input window, operand 12, single buffered']
    #allocation17 [shape = 's32[1]{0}', space=sflag, size = 0x4, scoped, tag = 'scoped memory for nn_concat_forward.1']
    #allocation18 [shape = 'u8[102400]{0}', space=vmem, size = 0x19000, scoped, tag = 'input window, operand 13, single buffered']
    #allocation19 [shape = 'u8[2048]{0}', space=vmem, size = 0x800, scoped, tag = 'input window, operand 14, single buffered']
    #allocation20 [shape = 's32[1]{0}', space=sflag, size = 0x4, scoped, tag = 'scoped memory for nn_concat_forward.1']
    #allocation21 [shape = 'u8[4096]{0}', space=vmem, size = 0x1000, scoped, tag = 'input window, operand 16, single buffered']
    #allocation22 [shape = 'u8[204800]{0}', space=vmem, size = 0x32000, scoped, tag = 'input window, operand 17, single buffered']
    #allocation23 [shape = 's32[1]{0}', space=sflag, size = 0x4, scoped, tag = 'scoped memory for nn_concat_forward.1']
    #allocation24 [shape = 'u8[4096]{0}', space=vmem, size = 0x1000, scoped, tag = 'input window, operand 18, single buffered']
    #allocation25 [shape = 'u8[102400]{0}', space=vmem, size = 0x19000, scoped, tag = 'input window, operand 19, single buffered']
    #allocation26 [shape = 's32[1]{0}', space=sflag, size = 0x4, scoped, tag = 'scoped memory for nn_concat_forward.1']
    #allocation27 [shape = 'u8[2048]{0}', space=vmem, size = 0x800, scoped, tag = 'input window, operand 20, single buffered']
    #allocation28 [shape = 'u8[53248]{0}', space=vmem, size = 0xd000, scoped, tag = 'input window, operand 22, single buffered']
    #allocation29 [shape = 's32[1]{0}', space=sflag, size = 0x4, scoped, tag = 'scoped memory for nn_concat_forward.1']
    #allocation30 [shape = 'u8[53248]{0}', space=vmem, size = 0xd000, scoped, tag = 'input window, operand 23, single buffered']
    #allocation31 [shape = 'u8[2048]{0}', space=vmem, size = 0x800, scoped, tag = 'input window, operand 24, single buffered']
    #allocation32 [shape = 's32[1]{0}', space=sflag, size = 0x4, scoped, tag = 'scoped memory for nn_concat_forward.1']
    %32 = vsyncpa [#allocation3], 0
    %33 = vsyncpa [#allocation5], 0
    %34 = vsyncpa [#allocation8], 0
    %35 = vsyncpa [#allocation11], 0
    %36 = vsyncpa [#allocation14], 0
    %37 = vsyncpa [#allocation17], 0
    %38 = vsyncpa [#allocation20], 0
    %39 = vsyncpa [#allocation23], 0
    %40 = vsyncpa [#allocation26], 0
    %41 = vsyncpa [#allocation29], 0
    %42 = vsyncpa [#allocation32], 0
    // Predicated region
    $region2: #{nn_concat_forward.1} parent=1 // pred_check
      _
    $region3: #{nn_concat_forward.1} parent=1 // pred_check_branch
      %44 = sbr.rel (0) target = $region5
    $region4: #{nn_concat_forward.1} parent=1 // pred_region
      _
    $region5: #{nn_concat_forward.1} parent=1 // pred_fallthru
      _
    // Predicated region
    $region6: #{nn_concat_forward.1} parent=1 // pred_check
      _
    $region7: #{nn_concat_forward.1} parent=1 // pred_check_branch
      %46 = sbr.rel (0) target = $region9
    $region8: #{nn_concat_forward.1} parent=1 // pred_region
      _
    $region9: #{nn_concat_forward.1} parent=1 // pred_fallthru
      _
    // Predicated region
    $region10: #{nn_concat_forward.1} parent=1 // pred_check
      _
    $region11: #{nn_concat_forward.1} parent=1 // pred_check_branch
      %48 = sbr.rel (0) target = $region13
    $region12: #{nn_concat_forward.1} parent=1 // pred_region
      _
    $region13: #{nn_concat_forward.1} parent=1 // pred_fallthru
      _
    // Predicated region
    $region14: #{nn_concat_forward.1} parent=1 // pred_check
      _
    $region15: #{nn_concat_forward.1} parent=1 // pred_check_branch
      %50 = sbr.rel (0) target = $region17
    $region16: #{nn_concat_forward.1} parent=1 // pred_region
      %s52 = ssub.s32 2048, 2048
      %53 = vsyncadd [#allocation3], %s52
      %s54 = sshll.u32 [#allocation2], 4
      %s55 = int_to_ptr.vmem [resolvable:$true] %s54
      %60 = dma.hbm_to_vmem [thread:$0]  %s3, 2048, %s55, [#allocation3], 256, 256, 16
    $region17: #{nn_concat_forward.1} parent=1 // pred_fallthru
      _
    // Predicated region
    $region18: #{nn_concat_forward.1} parent=1 // pred_check
      _
    $region19: #{nn_concat_forward.1} parent=1 // pred_check_branch
      %62 = sbr.rel (0) target = $region21
    $region20: #{nn_concat_forward.1} parent=1 // pred_region
      %s64 = ssub.s32 128, 128
      %65 = vsyncadd [#allocation5], %s64
      %s67 = sshll.u32 [#allocation4], 4
      %s68 = int_to_ptr.vmem [resolvable:$true] %s67
      %70 = dma.hbm_to_vmem [thread:$0]  %s4, 128, %s68, [#allocation5]
    $region21: #{nn_concat_forward.1} parent=1 // pred_fallthru
      _
    // Predicated region
    $region22: #{nn_concat_forward.1} parent=1 // pred_check
      _
    $region23: #{nn_concat_forward.1} parent=1 // pred_check_branch
      %72 = sbr.rel (0) target = $region25
    $region24: #{nn_concat_forward.1} parent=1 // pred_region
      %s74 = ssub.s32 6400, 6400
      %75 = vsyncadd [#allocation5], %s74
      %s76 = sshll.u32 [#allocation6], 4
      %s77 = int_to_ptr.vmem [resolvable:$true] %s76
      %82 = dma.hbm_to_vmem [thread:$0]  %s5, 6400, %s77, [#allocation5], 256, 256, 16
    $region25: #{nn_concat_forward.1} parent=1 // pred_fallthru
      _
    // Predicated region
    $region26: #{nn_concat_forward.1} parent=1 // pred_check
      _
    $region27: #{nn_concat_forward.1} parent=1 // pred_check_branch
      %84 = sbr.rel (0) target = $region29
    $region28: #{nn_concat_forward.1} parent=1 // pred_region
      %s86 = ssub.s32 32, 32
      %87 = vsyncadd [#allocation8], %s86
      %s89 = sshll.u32 [#allocation7], 4
      %s90 = int_to_ptr.vmem [resolvable:$true] %s89
      %92 = dma.hbm_to_vmem [thread:$0]  %s6, 32, %s90, [#allocation8]
    $region29: #{nn_concat_forward.1} parent=1 // pred_fallthru
      _
    // Predicated region
    $region30: #{nn_concat_forward.1} parent=1 // pred_check
      _
    $region31: #{nn_concat_forward.1} parent=1 // pred_check_branch
      %94 = sbr.rel (0) target = $region33
    $region32: #{nn_concat_forward.1} parent=1 // pred_region
      %s96 = ssub.s32 3200, 3200
      %97 = vsyncadd [#allocation8], %s96
      %s98 = sshll.u32 [#allocation9], 4
      %s99 = int_to_ptr.vmem [resolvable:$true] %s98
      %104 = dma.hbm_to_vmem [thread:$0]  %s7, 3200, %s99, [#allocation8], 128, 128, 8
    $region33: #{nn_concat_forward.1} parent=1 // pred_fallthru
      _
    // Predicated region
    $region34: #{nn_concat_forward.1} parent=1 // pred_check
      _
    $region35: #{nn_concat_forward.1} parent=1 // pred_check_branch
      %106 = sbr.rel (0) target = $region37
    $region36: #{nn_concat_forward.1} parent=1 // pred_region
      %s108 = ssub.s32 64, 64
      %109 = vsyncadd [#allocation11], %s108
      %s111 = sshll.u32 [#allocation10], 4
      %s112 = int_to_ptr.vmem [resolvable:$true] %s111
      %114 = dma.hbm_to_vmem [thread:$0]  %s8, 64, %s112, [#allocation11]
    $region37: #{nn_concat_forward.1} parent=1 // pred_fallthru
      _
    // Predicated region
    $region38: #{nn_concat_forward.1} parent=1 // pred_check
      _
    $region39: #{nn_concat_forward.1} parent=1 // pred_check_branch
      %116 = sbr.rel (0) target = $region41
    $region40: #{nn_concat_forward.1} parent=1 // pred_region
      %s118 = ssub.s32 1536, 1536
      %119 = vsyncadd [#allocation11], %s118
      %s120 = sshll.u32 [#allocation12], 4
      %s121 = int_to_ptr.vmem [resolvable:$true] %s120
      %126 = dma.hbm_to_vmem [thread:$0]  %s9, 1536, %s121, [#allocation11], 256, 256, 16
    $region41: #{nn_concat_forward.1} parent=1 // pred_fallthru
      _
    // Predicated region
    $region42: #{nn_concat_forward.1} parent=1 // pred_check
      _
    $region43: #{nn_concat_forward.1} parent=1 // pred_check_branch
      %128 = sbr.rel (0) target = $region45
    $region44: #{nn_concat_forward.1} parent=1 // pred_region
      %s130 = ssub.s32 128, 128
      %131 = vsyncadd [#allocation14], %s130
      %s133 = sshll.u32 [#allocation13], 4
      %s134 = int_to_ptr.vmem [resolvable:$true] %s133
      %136 = dma.hbm_to_vmem [thread:$0]  %s10, 128, %s134, [#allocation14]
    $region45: #{nn_concat_forward.1} parent=1 // pred_fallthru
      _
    // Predicated region
    $region46: #{nn_concat_forward.1} parent=1 // pred_check
      _
    $region47: #{nn_concat_forward.1} parent=1 // pred_check_branch
      %138 = sbr.rel (0) target = $region49
    $region48: #{nn_concat_forward.1} parent=1 // pred_region
      %s140 = ssub.s32 6400, 6400
      %141 = vsyncadd [#allocation14], %s140
      %s142 = sshll.u32 [#allocation15], 4
      %s143 = int_to_ptr.vmem [resolvable:$true] %s142
      %148 = dma.hbm_to_vmem [thread:$0]  %s11, 6400, %s143, [#allocation14], 256, 256, 16
    $region49: #{nn_concat_forward.1} parent=1 // pred_fallthru
      _
    // Predicated region
    $region50: #{nn_concat_forward.1} parent=1 // pred_check
      _
    $region51: #{nn_concat_forward.1} parent=1 // pred_check_branch
      %150 = sbr.rel (0) target = $region53
    $region52: #{nn_concat_forward.1} parent=1 // pred_region
      %s152 = ssub.s32 128, 128
      %153 = vsyncadd [#allocation17], %s152
      %s155 = sshll.u32 [#allocation16], 4
      %s156 = int_to_ptr.vmem [resolvable:$true] %s155
      %158 = dma.hbm_to_vmem [thread:$0]  %s12, 128, %s156, [#allocation17]
    $region53: #{nn_concat_forward.1} parent=1 // pred_fallthru
      _
    // Predicated region
    $region54: #{nn_concat_forward.1} parent=1 // pred_check
      _
    $region55: #{nn_concat_forward.1} parent=1 // pred_check_branch
      %160 = sbr.rel (0) target = $region57
    $region56: #{nn_concat_forward.1} parent=1 // pred_region
      %s162 = ssub.s32 3200, 3200
      %163 = vsyncadd [#allocation17], %s162
      %s164 = sshll.u32 [#allocation18], 4
      %s165 = int_to_ptr.vmem [resolvable:$true] %s164
      %170 = dma.hbm_to_vmem [thread:$0]  %s13, 3200, %s165, [#allocation17], 128, 128, 8
    $region57: #{nn_concat_forward.1} parent=1 // pred_fallthru
      _
    // Predicated region
    $region58: #{nn_concat_forward.1} parent=1 // pred_check
      _
    $region59: #{nn_concat_forward.1} parent=1 // pred_check_branch
      %172 = sbr.rel (0) target = $region61
    $region60: #{nn_concat_forward.1} parent=1 // pred_region
      %s174 = ssub.s32 64, 64
      %175 = vsyncadd [#allocation20], %s174
      %s177 = sshll.u32 [#allocation19], 4
      %s178 = int_to_ptr.vmem [resolvable:$true] %s177
      %180 = dma.hbm_to_vmem [thread:$0]  %s14, 64, %s178, [#allocation20]
    $region61: #{nn_concat_forward.1} parent=1 // pred_fallthru
      _
    // Predicated region
    $region62: #{nn_concat_forward.1} parent=1 // pred_check
      _
    $region63: #{nn_concat_forward.1} parent=1 // pred_check_branch
      %182 = sbr.rel (0) target = $region65
    $region64: #{nn_concat_forward.1} parent=1 // pred_region
      _
    $region65: #{nn_concat_forward.1} parent=1 // pred_fallthru
      _
    // Predicated region
    $region66: #{nn_concat_forward.1} parent=1 // pred_check
      _
    $region67: #{nn_concat_forward.1} parent=1 // pred_check_branch
      %184 = sbr.rel (0) target = $region69
    $region68: #{nn_concat_forward.1} parent=1 // pred_region
      %s186 = ssub.s32 128, 128
      %187 = vsyncadd [#allocation20], %s186
      %s189 = sshll.u32 [#allocation21], 4
      %s190 = int_to_ptr.vmem [resolvable:$true] %s189
      %192 = dma.hbm_to_vmem [thread:$0]  %s16, 128, %s190, [#allocation20]
    $region69: #{nn_concat_forward.1} parent=1 // pred_fallthru
      _
    // Predicated region
    $region70: #{nn_concat_forward.1} parent=1 // pred_check
      _
    $region71: #{nn_concat_forward.1} parent=1 // pred_check_branch
      %194 = sbr.rel (0) target = $region73
    $region72: #{nn_concat_forward.1} parent=1 // pred_region
      %s196 = ssub.s32 6400, 6400
      %197 = vsyncadd [#allocation23], %s196
      %s198 = sshll.u32 [#allocation22], 4
      %s199 = int_to_ptr.vmem [resolvable:$true] %s198
      %204 = dma.hbm_to_vmem [thread:$0]  %s17, 6400, %s199, [#allocation23], 256, 256, 16
    $region73: #{nn_concat_forward.1} parent=1 // pred_fallthru
      _
    // Predicated region
    $region74: #{nn_concat_forward.1} parent=1 // pred_check
      _
    $region75: #{nn_concat_forward.1} parent=1 // pred_check_branch
      %206 = sbr.rel (0) target = $region77
    $region76: #{nn_concat_forward.1} parent=1 // pred_region
      %s208 = ssub.s32 128, 128
      %209 = vsyncadd [#allocation23], %s208
      %s211 = sshll.u32 [#allocation24], 4
      %s212 = int_to_ptr.vmem [resolvable:$true] %s211
      %214 = dma.hbm_to_vmem [thread:$0]  %s18, 128, %s212, [#allocation23]
    $region77: #{nn_concat_forward.1} parent=1 // pred_fallthru
      _
    // Predicated region
    $region78: #{nn_concat_forward.1} parent=1 // pred_check
      _
    $region79: #{nn_concat_forward.1} parent=1 // pred_check_branch
      %216 = sbr.rel (0) target = $region81
    $region80: #{nn_concat_forward.1} parent=1 // pred_region
      %s218 = ssub.s32 3200, 3200
      %219 = vsyncadd [#allocation26], %s218
      %s220 = sshll.u32 [#allocation25], 4
      %s221 = int_to_ptr.vmem [resolvable:$true] %s220
      %226 = dma.hbm_to_vmem [thread:$0]  %s19, 3200, %s221, [#allocation26], 128, 128, 8
    $region81: #{nn_concat_forward.1} parent=1 // pred_fallthru
      _
    // Predicated region
    $region82: #{nn_concat_forward.1} parent=1 // pred_check
      _
    $region83: #{nn_concat_forward.1} parent=1 // pred_check_branch
      %228 = sbr.rel (0) target = $region85
    $region84: #{nn_concat_forward.1} parent=1 // pred_region
      %s230 = ssub.s32 64, 64
      %231 = vsyncadd [#allocation26], %s230
      %s233 = sshll.u32 [#allocation27], 4
      %s234 = int_to_ptr.vmem [resolvable:$true] %s233
      %236 = dma.hbm_to_vmem [thread:$0]  %s20, 64, %s234, [#allocation26]
    $region85: #{nn_concat_forward.1} parent=1 // pred_fallthru
      _
    // Predicated region
    $region86: #{nn_concat_forward.1} parent=1 // pred_check
      _
    $region87: #{nn_concat_forward.1} parent=1 // pred_check_branch
      %238 = sbr.rel (0) target = $region89
    $region88: #{nn_concat_forward.1} parent=1 // pred_region
      _
    $region89: #{nn_concat_forward.1} parent=1 // pred_fallthru
      _
    // Predicated region
    $region90: #{nn_concat_forward.1} parent=1 // pred_check
      _
    $region91: #{nn_concat_forward.1} parent=1 // pred_check_branch
      %240 = sbr.rel (0) target = $region93
    $region92: #{nn_concat_forward.1} parent=1 // pred_region
      %s242 = ssub.s32 1664, 1664
      %243 = vsyncadd [#allocation29], %s242
      %s244 = sshll.u32 [#allocation28], 4
      %s245 = int_to_ptr.vmem [resolvable:$true] %s244
      %250 = dma.hbm_to_vmem [thread:$0]  %s22, 1664, %s245, [#allocation29], 128, 128, 8
    $region93: #{nn_concat_forward.1} parent=1 // pred_fallthru
      _
    // Predicated region
    $region94: #{nn_concat_forward.1} parent=1 // pred_check
      _
    $region95: #{nn_concat_forward.1} parent=1 // pred_check_branch
      %252 = sbr.rel (0) target = $region97
    $region96: #{nn_concat_forward.1} parent=1 // pred_region
      %s254 = ssub.s32 1664, 1664
      %255 = vsyncadd [#allocation29], %s254
      %s256 = sshll.u32 [#allocation30], 4
      %s257 = int_to_ptr.vmem [resolvable:$true] %s256
      %262 = dma.hbm_to_vmem [thread:$0]  %s23, 1664, %s257, [#allocation29], 128, 128, 8
    $region97: #{nn_concat_forward.1} parent=1 // pred_fallthru
      _
    // Predicated region
    $region98: #{nn_concat_forward.1} parent=1 // pred_check
      _
    $region99: #{nn_concat_forward.1} parent=1 // pred_check_branch
      %264 = sbr.rel (0) target = $region101
    $region100: #{nn_concat_forward.1} parent=1 // pred_region
      %s266 = ssub.s32 64, 64
      %267 = vsyncadd [#allocation32], %s266
      %s269 = sshll.u32 [#allocation31], 4
      %s270 = int_to_ptr.vmem [resolvable:$true] %s269
      %272 = dma.hbm_to_vmem [thread:$0]  %s24, 64, %s270, [#allocation32]
    $region101: #{nn_concat_forward.1} parent=1 // pred_fallthru
      _
    // Predicated region
    $region102: #{nn_concat_forward.1} parent=1 // pred_check
      _
    $region103: #{nn_concat_forward.1} parent=1 // pred_check_branch
      %274 = sbr.rel (0) target = $region105
    $region104: #{nn_concat_forward.1} parent=1 // pred_region
      _
    $region105: #{nn_concat_forward.1} parent=1 // pred_fallthru
      _
    // Predicated region
    $region106: #{nn_concat_forward.1} parent=1 // pred_check
      _
    $region107: #{nn_concat_forward.1} parent=1 // pred_check_branch
      %276 = sbr.rel (0) target = $region109
    $region108: #{nn_concat_forward.1} parent=1 // pred_region
      _
    $region109: #{nn_concat_forward.1} parent=1 // pred_fallthru
      _
    // Predicated region
    $region110: #{nn_concat_forward.1} parent=1 // pred_check
      _
    $region111: #{nn_concat_forward.1} parent=1 // pred_check_branch
      %278 = sbr.rel (0) target = $region113
    $region112: #{nn_concat_forward.1} parent=1 // pred_region
      %279 = dma.done [#allocation3], 2048
    $region113: #{nn_concat_forward.1} parent=1 // pred_fallthru
      _
    // Predicated region
    $region114: #{nn_concat_forward.1} parent=1 // pred_check
      _
    $region115: #{nn_concat_forward.1} parent=1 // pred_check_branch
      %281 = sbr.rel (0) target = $region117
    $region116: #{nn_concat_forward.1} parent=1 // pred_region
      %282 = dma.done [#allocation5], 128
    $region117: #{nn_concat_forward.1} parent=1 // pred_fallthru
      _
    // Predicated region
    $region118: #{nn_concat_forward.1} parent=1 // pred_check
      _
    $region119: #{nn_concat_forward.1} parent=1 // pred_check_branch
      %284 = sbr.rel (0) target = $region121
    $region120: #{nn_concat_forward.1} parent=1 // pred_region
      %285 = dma.done [#allocation5], 6400
    $region121: #{nn_concat_forward.1} parent=1 // pred_fallthru
      _
    // Predicated region
    $region122: #{nn_concat_forward.1} parent=1 // pred_check
      _
    $region123: #{nn_concat_forward.1} parent=1 // pred_check_branch
      %287 = sbr.rel (0) target = $region125
    $region124: #{nn_concat_forward.1} parent=1 // pred_region
      %288 = dma.done [#allocation8], 32
    $region125: #{nn_concat_forward.1} parent=1 // pred_fallthru
      _
    // Predicated region
    $region126: #{nn_concat_forward.1} parent=1 // pred_check
      _
    $region127: #{nn_concat_forward.1} parent=1 // pred_check_branch
      %290 = sbr.rel (0) target = $region129
    $region128: #{nn_concat_forward.1} parent=1 // pred_region
      %291 = dma.done [#allocation8], 3200
    $region129: #{nn_concat_forward.1} parent=1 // pred_fallthru
      _
    // Predicated region
    $region130: #{nn_concat_forward.1} parent=1 // pred_check
      _
    $region131: #{nn_concat_forward.1} parent=1 // pred_check_branch
      %293 = sbr.rel (0) target = $region133
    $region132: #{nn_concat_forward.1} parent=1 // pred_region
      %294 = dma.done [#allocation11], 64
    $region133: #{nn_concat_forward.1} parent=1 // pred_fallthru
      _
    // Predicated region
    $region134: #{nn_concat_forward.1} parent=1 // pred_check
      _
    $region135: #{nn_concat_forward.1} parent=1 // pred_check_branch
      %296 = sbr.rel (0) target = $region137
    $region136: #{nn_concat_forward.1} parent=1 // pred_region
      %297 = dma.done [#allocation11], 1536
    $region137: #{nn_concat_forward.1} parent=1 // pred_fallthru
      _
    // Predicated region
    $region138: #{nn_concat_forward.1} parent=1 // pred_check
      _
    $region139: #{nn_concat_forward.1} parent=1 // pred_check_branch
      %299 = sbr.rel (0) target = $region141
    $region140: #{nn_concat_forward.1} parent=1 // pred_region
      %300 = dma.done [#allocation14], 128
    $region141: #{nn_concat_forward.1} parent=1 // pred_fallthru
      _
    // Predicated region
    $region142: #{nn_concat_forward.1} parent=1 // pred_check
      _
    $region143: #{nn_concat_forward.1} parent=1 // pred_check_branch
      %302 = sbr.rel (0) target = $region145
    $region144: #{nn_concat_forward.1} parent=1 // pred_region
      %303 = dma.done [#allocation14], 6400
    $region145: #{nn_concat_forward.1} parent=1 // pred_fallthru
      _
    // Predicated region
    $region146: #{nn_concat_forward.1} parent=1 // pred_check
      _
    $region147: #{nn_concat_forward.1} parent=1 // pred_check_branch
      %305 = sbr.rel (0) target = $region149
    $region148: #{nn_concat_forward.1} parent=1 // pred_region
      %306 = dma.done [#allocation17], 128
    $region149: #{nn_concat_forward.1} parent=1 // pred_fallthru
      _
    // Predicated region
    $region150: #{nn_concat_forward.1} parent=1 // pred_check
      _
    $region151: #{nn_concat_forward.1} parent=1 // pred_check_branch
      %308 = sbr.rel (0) target = $region153
    $region152: #{nn_concat_forward.1} parent=1 // pred_region
      %309 = dma.done [#allocation17], 3200
    $region153: #{nn_concat_forward.1} parent=1 // pred_fallthru
      _
    // Predicated region
    $region154: #{nn_concat_forward.1} parent=1 // pred_check
      _
    $region155: #{nn_concat_forward.1} parent=1 // pred_check_branch
      %311 = sbr.rel (0) target = $region157
    $region156: #{nn_concat_forward.1} parent=1 // pred_region
      %312 = dma.done [#allocation20], 64
    $region157: #{nn_concat_forward.1} parent=1 // pred_fallthru
      _
    // Predicated region
    $region158: #{nn_concat_forward.1} parent=1 // pred_check
      _
    $region159: #{nn_concat_forward.1} parent=1 // pred_check_branch
      %314 = sbr.rel (0) target = $region161
    $region160: #{nn_concat_forward.1} parent=1 // pred_region
      %315 = dma.done [#allocation20], 128
    $region161: #{nn_concat_forward.1} parent=1 // pred_fallthru
      _
    // Predicated region
    $region162: #{nn_concat_forward.1} parent=1 // pred_check
      _
    $region163: #{nn_concat_forward.1} parent=1 // pred_check_branch
      %317 = sbr.rel (0) target = $region165
    $region164: #{nn_concat_forward.1} parent=1 // pred_region
      %318 = dma.done [#allocation23], 6400
    $region165: #{nn_concat_forward.1} parent=1 // pred_fallthru
      _
    // Predicated region
    $region166: #{nn_concat_forward.1} parent=1 // pred_check
      _
    $region167: #{nn_concat_forward.1} parent=1 // pred_check_branch
      %320 = sbr.rel (0) target = $region169
    $region168: #{nn_concat_forward.1} parent=1 // pred_region
      %321 = dma.done [#allocation23], 128
    $region169: #{nn_concat_forward.1} parent=1 // pred_fallthru
      _
    // Predicated region
    $region170: #{nn_concat_forward.1} parent=1 // pred_check
      _
    $region171: #{nn_concat_forward.1} parent=1 // pred_check_branch
      %323 = sbr.rel (0) target = $region173
    $region172: #{nn_concat_forward.1} parent=1 // pred_region
      %324 = dma.done [#allocation26], 3200
    $region173: #{nn_concat_forward.1} parent=1 // pred_fallthru
      _
    // Predicated region
    $region174: #{nn_concat_forward.1} parent=1 // pred_check
      _
    $region175: #{nn_concat_forward.1} parent=1 // pred_check_branch
      %326 = sbr.rel (0) target = $region177
    $region176: #{nn_concat_forward.1} parent=1 // pred_region
      %327 = dma.done [#allocation26], 64
    $region177: #{nn_concat_forward.1} parent=1 // pred_fallthru
      _
    // Predicated region
    $region178: #{nn_concat_forward.1} parent=1 // pred_check
      _
    $region179: #{nn_concat_forward.1} parent=1 // pred_check_branch
      %329 = sbr.rel (0) target = $region181
    $region180: #{nn_concat_forward.1} parent=1 // pred_region
      %330 = dma.done [#allocation29], 1664
    $region181: #{nn_concat_forward.1} parent=1 // pred_fallthru
      _
    // Predicated region
    $region182: #{nn_concat_forward.1} parent=1 // pred_check
      _
    $region183: #{nn_concat_forward.1} parent=1 // pred_check_branch
      %332 = sbr.rel (0) target = $region185
    $region184: #{nn_concat_forward.1} parent=1 // pred_region
      %333 = dma.done [#allocation29], 1664
    $region185: #{nn_concat_forward.1} parent=1 // pred_fallthru
      _
    // Predicated region
    $region186: #{nn_concat_forward.1} parent=1 // pred_check
      _
    $region187: #{nn_concat_forward.1} parent=1 // pred_check_branch
      %335 = sbr.rel (0) target = $region189
    $region188: #{nn_concat_forward.1} parent=1 // pred_region
      %336 = dma.done [#allocation32], 64
    $region189: #{nn_concat_forward.1} parent=1 // pred_fallthru
      _
    %v337 = vld [vmem:[%s0] sm:$0xff]
    %v338 = vld [vmem:[#allocation2] sm:$0xff]
    %v339 = vld [vmem:[#allocation2 + $0x8] sm:$0xff]
    %v340 = vld [vmem:[#allocation2 + $0x10] sm:$0xff]
    %v341 = vld [vmem:[#allocation2 + $0x18] sm:$0xff]
    %v342 = vld [vmem:[#allocation2 + $0x20] sm:$0xff]
    %v343 = vld [vmem:[#allocation2 + $0x28] sm:$0xff]
    %v344 = vld [vmem:[#allocation2 + $0x30] sm:$0xff]
    %v345 = vld [vmem:[#allocation2 + $0x38] sm:$0xff]
    %v346 = vld [vmem:[#allocation2 + $0x40] sm:$0xff]
    %v347 = vld [vmem:[#allocation2 + $0x48] sm:$0xff]
    %v348 = vld [vmem:[#allocation2 + $0x50] sm:$0xff]
    %v349 = vld [vmem:[#allocation2 + $0x58] sm:$0xff]
    %v350 = vld [vmem:[#allocation2 + $0x60] sm:$0xff]
    %v351 = vld [vmem:[#allocation2 + $0x68] sm:$0xff]
    %v352 = vld [vmem:[#allocation2 + $0x70] sm:$0xff]
    %v353 = vld [vmem:[#allocation2 + $0x78] sm:$0xff]
    %v354 = vld [vmem:[#allocation4] sm:$0x77]
    %v356 = vlaneseq
    %v357 = vshrl.u32 %v356, 7
    %v358 = vsub.s32 0, %v357
    %v359 = vrot.slane %v354, %v358
    %v360 = vlaneseq
    %v361 = vshrl.u32 %v360, 7
    %v362 = vsub.s32 4, %v361
    %v363 = vrot.slane %v354, %v362
    %v366 = vlaneseq
    %v367 = vshrl.u32 %v366, 7
    %v368 = vsub.s32 0, %v367
    %v369 = vrot.slane %v359, %v368
    %v370 = vlaneseq
    %v371 = vshrl.u32 %v370, 7
    %v372 = vsub.s32 0, %v371
    %v373 = vrot.slane %v363, %v372
    %vm374 = vcmask 523264
    %v376 = vsel %vm374, %v337, 0
    %378 = vmatprep.subr.mxu0 %v339
    %379 = vmatpush1.msra.mxu0 %v338
    %380 = vmatprep.subr.mxu0 %v341
    %381 = vmatpush1.msra.mxu0 %v340
    %382 = vmatprep.subr.mxu0 %v343
    %383 = vmatpush1.msra.mxu0 %v342
    %384 = vmatprep.subr.mxu0 %v345
    %385 = vmatpush1.msra.mxu0 %v344
    %386 = vmatprep.subr.mxu0 %v347
    %387 = vmatpush1.msra.mxu0 %v346
    %388 = vmatprep.subr.mxu0 %v349
    %389 = vmatpush1.msra.mxu0 %v348
    %390 = vmatprep.subr.mxu0 %v351
    %391 = vmatpush1.msra.mxu0 %v350
    %392 = vmatprep.subr.mxu0 %v353
    %393 = vmatpush1.msra.mxu0 %v352
    %394 = vmatprep.subr.mxu0 0.0
    %395 = vmatpush1.msra.mxu0 0.0
    %396 = vmatprep.subr.mxu0 0.0
    %397 = vmatpush1.msra.mxu0 0.0
    %398 = vmatprep.subr.mxu0 0.0
    %399 = vmatpush1.msra.mxu0 0.0
    %400 = vmatprep.subr.mxu0 0.0
    %401 = vmatpush1.msra.mxu0 0.0
    %402 = vmatprep.subr.mxu0 0.0
    %403 = vmatpush1.msra.mxu0 0.0
    %404 = vmatprep.subr.mxu0 0.0
    %405 = vmatpush1.msra.mxu0 0.0
    %406 = vmatprep.subr.mxu0 0.0
    %407 = vmatpush1.msra.mxu0 0.0
    %408 = vmatprep.subr.mxu0 0.0
    %409 = vmatpush1.msra.mxu0 0.0
    %410 = vmatprep.subr.mxu0 0.0
    %411 = vmatpush1.msra.mxu0 0.0
    %412 = vmatprep.subr.mxu0 0.0
    %413 = vmatpush1.msra.mxu0 0.0
    %414 = vmatprep.subr.mxu0 0.0
    %415 = vmatpush1.msra.mxu0 0.0
    %416 = vmatprep.subr.mxu0 0.0
    %417 = vmatpush1.msra.mxu0 0.0
    %418 = vmatprep.subr.mxu0 0.0
    %419 = vmatpush1.msra.mxu0 0.0
    %420 = vmatprep.subr.mxu0 0.0
    %421 = vmatpush1.msra.mxu0 0.0
    %422 = vmatprep.subr.mxu0 0.0
    %423 = vmatpush1.msra.mxu0 0.0
    %424 = vmatprep.subr.mxu0 0.0
    %425 = vmatpush1.msra.mxu0 0.0
    %426 = vmatprep.subr.mxu0 0.0
    %427 = vmatpush1.msra.mxu0 0.0
    %428 = vmatprep.subr.mxu0 0.0
    %429 = vmatpush1.msra.mxu0 0.0
    %430 = vmatprep.subr.mxu0 0.0
    %431 = vmatpush1.msra.mxu0 0.0
    %432 = vmatprep.subr.mxu0 0.0
    %433 = vmatpush1.msra.mxu0 0.0
    %434 = vmatprep.subr.mxu0 0.0
    %435 = vmatpush1.msra.mxu0 0.0
    %436 = vmatprep.subr.mxu0 0.0
    %437 = vmatpush1.msra.mxu0 0.0
    %438 = vmatprep.subr.mxu0 0.0
    %439 = vmatpush1.msra.mxu0 0.0
    %440 = vmatprep.subr.mxu0 0.0
    %441 = vmatpush1.msra.mxu0 0.0
    %442 = vmatprep.mubr.f32.mxu0 0.0
    %443 = vmatmul.mubr.f32.gmra.mrb[0].mxu0 %v376
    %v444 = vpop.f32.mrb[0].mxu0
    %v445 = vadd.f32 %v369, %v444
    %v446 = vpop.f32.mrb[0].mxu0
    %v447 = vadd.f32 %v373, %v446
    %448 = vdwg.mxu0
    %vm449 = vcmp.ge.f32.partialorder %v445, 0.0
    %vm450 = vcmp.ge.f32.partialorder %v447, 0.0
    %v451 = vmul.f32 %v445, 0.25
    %v452 = vmul.f32 %v447, 0.25
    %v453 = vsel %vm449, %v445, %v451
    %v454 = vsel %vm450, %v447, %v452
    %v455 = vlaneseq
    %v456 = vshrl.u32 %v455, 7
    %v457 = vsub.s32 1, %v456
    %v458 = vrot.slane %v354, %v457
    %v459 = vlaneseq
    %v460 = vshrl.u32 %v459, 7
    %v461 = vsub.s32 5, %v460
    %v462 = vrot.slane %v354, %v461
    %v465 = vlaneseq
    %v466 = vshrl.u32 %v465, 7
    %v467 = vsub.s32 1, %v466
    %v468 = vrot.slane %v458, %v467
    %v469 = vlaneseq
    %v470 = vshrl.u32 %v469, 7
    %v471 = vsub.s32 1, %v470
    %v472 = vrot.slane %v462, %v471
    %v473 = vmul.f32 %v453, %v468
    %v474 = vmul.f32 %v454, %v472
    %v475 = vlaneseq
    %v476 = vshrl.u32 %v475, 7
    %v477 = vsub.s32 2, %v476
    %v478 = vrot.slane %v354, %v477
    %v479 = vlaneseq
    %v480 = vshrl.u32 %v479, 7
    %v481 = vsub.s32 6, %v480
    %v482 = vrot.slane %v354, %v481
    %v485 = vlaneseq
    %v486 = vshrl.u32 %v485, 7
    %v487 = vsub.s32 2, %v486
    %v488 = vrot.slane %v478, %v487
    %v489 = vlaneseq
    %v490 = vshrl.u32 %v489, 7
    %v491 = vsub.s32 2, %v490
    %v492 = vrot.slane %v482, %v491
    %v493 = vadd.f32 %v473, %v488
    %v494 = vadd.f32 %v474, %v492
    %v495 = vld [vmem:[#allocation6] sm:$0xff]
    %v496 = vld [vmem:[#allocation6 + $0x8] sm:$0xff]
    %v497 = vld [vmem:[#allocation6 + $0x10] sm:$0xff]
    %v498 = vld [vmem:[#allocation6 + $0x18] sm:$0xff]
    %v499 = vld [vmem:[#allocation6 + $0x20] sm:$0xff]
    %v500 = vld [vmem:[#allocation6 + $0x28] sm:$0xff]
    %v501 = vld [vmem:[#allocation6 + $0x30] sm:$0xff]
    %v502 = vld [vmem:[#allocation6 + $0x38] sm:$0xff]
    %v503 = vld [vmem:[#allocation6 + $0x40] sm:$0xff]
    %v504 = vld [vmem:[#allocation6 + $0x48] sm:$0xff]
    %v505 = vld [vmem:[#allocation6 + $0x50] sm:$0xff]
    %v506 = vld [vmem:[#allocation6 + $0x58] sm:$0xff]
    %v507 = vld [vmem:[#allocation6 + $0x60] sm:$0xff]
    %v508 = vld [vmem:[#allocation6 + $0x68] sm:$0xff]
    %v509 = vld [vmem:[#allocation6 + $0x70] sm:$0xff]
    %v510 = vld [vmem:[#allocation6 + $0x78] sm:$0xff]
    %v511 = vld [vmem:[#allocation6 + $0x80] sm:$0xff]
    %v512 = vld [vmem:[#allocation6 + $0x88] sm:$0xff]
    %v513 = vld [vmem:[#allocation6 + $0x90] sm:$0xff]
    %v514 = vld [vmem:[#allocation6 + $0x98] sm:$0xff]
    %v515 = vld [vmem:[#allocation6 + $0xa0] sm:$0xff]
    %v516 = vld [vmem:[#allocation6 + $0xa8] sm:$0xff]
    %v517 = vld [vmem:[#allocation6 + $0xb0] sm:$0xff]
    %v518 = vld [vmem:[#allocation6 + $0xb8] sm:$0xff]
    %v519 = vld [vmem:[#allocation6 + $0xc0] sm:$0xff]
    %v520 = vld [vmem:[#allocation6 + $0xc8] sm:$0xff]
    %v521 = vld [vmem:[#allocation6 + $0xd0] sm:$0xff]
    %v522 = vld [vmem:[#allocation6 + $0xd8] sm:$0xff]
    %v523 = vld [vmem:[#allocation6 + $0xe0] sm:$0xff]
    %v524 = vld [vmem:[#allocation6 + $0xe8] sm:$0xff]
    %v525 = vld [vmem:[#allocation6 + $0xf0] sm:$0xff]
    %v526 = vld [vmem:[#allocation6 + $0xf8] sm:$0xff]
    %v527 = vld [vmem:[#allocation6 + $0x100] sm:$0xff]
    %v528 = vld [vmem:[#allocation6 + $0x108] sm:$0xff]
    %v529 = vld [vmem:[#allocation6 + $0x110] sm:$0xff]
    %v530 = vld [vmem:[#allocation6 + $0x118] sm:$0xff]
    %v531 = vld [vmem:[#allocation6 + $0x120] sm:$0xff]
    %v532 = vld [vmem:[#allocation6 + $0x128] sm:$0xff]
    %v533 = vld [vmem:[#allocation6 + $0x130] sm:$0xff]
    %v534 = vld [vmem:[#allocation6 + $0x138] sm:$0xff]
    %v535 = vld [vmem:[#allocation6 + $0x140] sm:$0xff]
    %v536 = vld [vmem:[#allocation6 + $0x148] sm:$0xff]
    %v537 = vld [vmem:[#allocation6 + $0x150] sm:$0xff]
    %v538 = vld [vmem:[#allocation6 + $0x158] sm:$0xff]
    %v539 = vld [vmem:[#allocation6 + $0x160] sm:$0xff]
    %v540 = vld [vmem:[#allocation6 + $0x168] sm:$0xff]
    %v541 = vld [vmem:[#allocation6 + $0x170] sm:$0xff]
    %v542 = vld [vmem:[#allocation6 + $0x178] sm:$0xff]
    %v543 = vld [vmem:[#allocation6 + $0x180] sm:$0xff]
    %v544 = vld [vmem:[#allocation6 + $0x188] sm:$0xff]
    %v545 = vld [vmem:[#allocation7] sm:$0x3]
    %v547 = vlaneseq
    %v548 = vshrl.u32 %v547, 7
    %v549 = vsub.s32 0, %v548
    %v550 = vrot.slane %v545, %v549
    %v551 = vlaneseq
    %v552 = vshrl.u32 %v551, 7
    %v553 = vsub.s32 1, %v552
    %v554 = vrot.slane %v545, %v553
    %vm557 = vcmask 588800
    %v559 = vsel %vm557, %v494, 0
    %561 = vmatprep.subr.mxu0 %v496
    %562 = vmatpush1.msra.mxu0 %v495
    %563 = vmatprep.subr.mxu0 %v498
    %564 = vmatpush1.msra.mxu0 %v497
    %565 = vmatprep.subr.mxu0 %v500
    %566 = vmatpush1.msra.mxu0 %v499
    %567 = vmatprep.subr.mxu0 %v502
    %568 = vmatpush1.msra.mxu0 %v501
    %569 = vmatprep.subr.mxu0 %v504
    %570 = vmatpush1.msra.mxu0 %v503
    %571 = vmatprep.subr.mxu0 %v506
    %572 = vmatpush1.msra.mxu0 %v505
    %573 = vmatprep.subr.mxu0 %v508
    %574 = vmatpush1.msra.mxu0 %v507
    %575 = vmatprep.subr.mxu0 %v510
    %576 = vmatpush1.msra.mxu0 %v509
    %577 = vmatprep.subr.mxu0 %v512
    %578 = vmatpush1.msra.mxu0 %v511
    %579 = vmatprep.subr.mxu0 %v514
    %580 = vmatpush1.msra.mxu0 %v513
    %581 = vmatprep.subr.mxu0 %v516
    %582 = vmatpush1.msra.mxu0 %v515
    %583 = vmatprep.subr.mxu0 %v518
    %584 = vmatpush1.msra.mxu0 %v517
    %585 = vmatprep.subr.mxu0 %v520
    %586 = vmatpush1.msra.mxu0 %v519
    %587 = vmatprep.subr.mxu0 %v522
    %588 = vmatpush1.msra.mxu0 %v521
    %589 = vmatprep.subr.mxu0 %v524
    %590 = vmatpush1.msra.mxu0 %v523
    %591 = vmatprep.subr.mxu0 %v526
    %592 = vmatpush1.msra.mxu0 %v525
    %593 = vmatprep.subr.mxu0 %v528
    %594 = vmatpush1.msra.mxu0 %v527
    %595 = vmatprep.subr.mxu0 %v530
    %596 = vmatpush1.msra.mxu0 %v529
    %597 = vmatprep.subr.mxu0 %v532
    %598 = vmatpush1.msra.mxu0 %v531
    %599 = vmatprep.subr.mxu0 %v534
    %600 = vmatpush1.msra.mxu0 %v533
    %601 = vmatprep.subr.mxu0 %v536
    %602 = vmatpush1.msra.mxu0 %v535
    %603 = vmatprep.subr.mxu0 %v538
    %604 = vmatpush1.msra.mxu0 %v537
    %605 = vmatprep.subr.mxu0 %v540
    %606 = vmatpush1.msra.mxu0 %v539
    %607 = vmatprep.subr.mxu0 %v542
    %608 = vmatpush1.msra.mxu0 %v541
    %609 = vmatprep.subr.mxu0 %v544
    %610 = vmatpush1.msra.mxu0 %v543
    %611 = vmatprep.subr.mxu0 0.0
    %612 = vmatpush1.msra.mxu0 0.0
    %613 = vmatprep.subr.mxu0 0.0
    %614 = vmatpush1.msra.mxu0 0.0
    %615 = vmatprep.subr.mxu0 0.0
    %616 = vmatpush1.msra.mxu0 0.0
    %617 = vmatprep.subr.mxu0 0.0
    %618 = vmatpush1.msra.mxu0 0.0
    %619 = vmatprep.subr.mxu0 0.0
    %620 = vmatpush1.msra.mxu0 0.0
    %621 = vmatprep.subr.mxu0 0.0
    %622 = vmatpush1.msra.mxu0 0.0
    %623 = vmatprep.subr.mxu0 0.0
    %624 = vmatpush1.msra.mxu0 0.0
    %625 = vmatprep.mubr.f32.mxu0 %v559
    %626 = vmatmul.mubr.f32.gmra.mrb[0].mxu0 %v493
    %v627 = vpop.f32.mrb[0].mxu0
    %v628 = vadd.f32 %v550, %v627
    %v629 = vpop.f32.mrb[0].mxu0
    %v630 = vadd.f32 %v554, %v629
    %631 = vdwg.mxu0
    %v632 = vld [vmem:[#allocation9] sm:$0xff]
    %v633 = vld [vmem:[#allocation9 + $0x8] sm:$0xff]
    %v634 = vld [vmem:[#allocation9 + $0x10] sm:$0xff]
    %v635 = vld [vmem:[#allocation9 + $0x18] sm:$0xff]
    %v636 = vld [vmem:[#allocation9 + $0x20] sm:$0xff]
    %v637 = vld [vmem:[#allocation9 + $0x28] sm:$0xff]
    %v638 = vld [vmem:[#allocation9 + $0x30] sm:$0xff]
    %v639 = vld [vmem:[#allocation9 + $0x38] sm:$0xff]
    %v640 = vld [vmem:[#allocation9 + $0x40] sm:$0xff]
    %v641 = vld [vmem:[#allocation9 + $0x48] sm:$0xff]
    %v642 = vld [vmem:[#allocation9 + $0x50] sm:$0xff]
    %v643 = vld [vmem:[#allocation9 + $0x58] sm:$0xff]
    %v644 = vld [vmem:[#allocation9 + $0x60] sm:$0xff]
    %v645 = vld [vmem:[#allocation9 + $0x68] sm:$0xff]
    %v646 = vld [vmem:[#allocation9 + $0x70] sm:$0xff]
    %v647 = vld [vmem:[#allocation9 + $0x78] sm:$0xff]
    %v648 = vld [vmem:[#allocation9 + $0x80] sm:$0xff]
    %v649 = vld [vmem:[#allocation9 + $0x88] sm:$0xff]
    %v650 = vld [vmem:[#allocation9 + $0x90] sm:$0xff]
    %v651 = vld [vmem:[#allocation9 + $0x98] sm:$0xff]
    %v652 = vld [vmem:[#allocation9 + $0xa0] sm:$0xff]
    %v653 = vld [vmem:[#allocation9 + $0xa8] sm:$0xff]
    %v654 = vld [vmem:[#allocation9 + $0xb0] sm:$0xff]
    %v655 = vld [vmem:[#allocation9 + $0xb8] sm:$0xff]
    %v656 = vld [vmem:[#allocation9 + $0xc0] sm:$0xff]
    %v657 = vld [vmem:[#allocation10] sm:$0x7]
    %v658 = vlaneseq
    %v659 = vshrl.u32 %v658, 7
    %v660 = vsub.s32 0, %v659
    %v661 = vrot.slane %v657, %v660
    %v663 = vsel %vm557, %v630, 0
    %665 = vmatprep.subr.mxu0 0.0
    %666 = vmatpush1.msra.mxu0 %v632
    %667 = vmatprep.subr.mxu0 0.0
    %668 = vmatpush1.msra.mxu0 %v633
    %669 = vmatprep.subr.mxu0 0.0
    %670 = vmatpush1.msra.mxu0 %v634
    %671 = vmatprep.subr.mxu0 0.0
    %672 = vmatpush1.msra.mxu0 %v635
    %673 = vmatprep.subr.mxu0 0.0
    %674 = vmatpush1.msra.mxu0 %v636
    %675 = vmatprep.subr.mxu0 0.0
    %676 = vmatpush1.msra.mxu0 %v637
    %677 = vmatprep.subr.mxu0 0.0
    %678 = vmatpush1.msra.mxu0 %v638
    %679 = vmatprep.subr.mxu0 0.0
    %680 = vmatpush1.msra.mxu0 %v639
    %681 = vmatprep.subr.mxu0 0.0
    %682 = vmatpush1.msra.mxu0 %v640
    %683 = vmatprep.subr.mxu0 0.0
    %684 = vmatpush1.msra.mxu0 %v641
    %685 = vmatprep.subr.mxu0 0.0
    %686 = vmatpush1.msra.mxu0 %v642
    %687 = vmatprep.subr.mxu0 0.0
    %688 = vmatpush1.msra.mxu0 %v643
    %689 = vmatprep.subr.mxu0 0.0
    %690 = vmatpush1.msra.mxu0 %v644
    %691 = vmatprep.subr.mxu0 0.0
    %692 = vmatpush1.msra.mxu0 %v645
    %693 = vmatprep.subr.mxu0 0.0
    %694 = vmatpush1.msra.mxu0 %v646
    %695 = vmatprep.subr.mxu0 0.0
    %696 = vmatpush1.msra.mxu0 %v647
    %697 = vmatprep.subr.mxu0 0.0
    %698 = vmatpush1.msra.mxu0 %v648
    %699 = vmatprep.subr.mxu0 0.0
    %700 = vmatpush1.msra.mxu0 %v649
    %701 = vmatprep.subr.mxu0 0.0
    %702 = vmatpush1.msra.mxu0 %v650
    %703 = vmatprep.subr.mxu0 0.0
    %704 = vmatpush1.msra.mxu0 %v651
    %705 = vmatprep.subr.mxu0 0.0
    %706 = vmatpush1.msra.mxu0 %v652
    %707 = vmatprep.subr.mxu0 0.0
    %708 = vmatpush1.msra.mxu0 %v653
    %709 = vmatprep.subr.mxu0 0.0
    %710 = vmatpush1.msra.mxu0 %v654
    %711 = vmatprep.subr.mxu0 0.0
    %712 = vmatpush1.msra.mxu0 %v655
    %713 = vmatprep.subr.mxu0 0.0
    %714 = vmatpush1.msra.mxu0 %v656
    %715 = vmatprep.subr.mxu0 0.0
    %716 = vmatpush1.msra.mxu0 0.0
    %717 = vmatprep.subr.mxu0 0.0
    %718 = vmatpush1.msra.mxu0 0.0
    %719 = vmatprep.subr.mxu0 0.0
    %720 = vmatpush1.msra.mxu0 0.0
    %721 = vmatprep.subr.mxu0 0.0
    %722 = vmatpush1.msra.mxu0 0.0
    %723 = vmatprep.subr.mxu0 0.0
    %724 = vmatpush1.msra.mxu0 0.0
    %725 = vmatprep.subr.mxu0 0.0
    %726 = vmatpush1.msra.mxu0 0.0
    %727 = vmatprep.subr.mxu0 0.0
    %728 = vmatpush1.msra.mxu0 0.0
    %729 = vmatprep.mubr.f32.mxu0 %v663
    %730 = vmatmul.mubr.f32.gmra.mrb[0].mxu0 %v628
    %v731 = vpop.f32.mrb[0].mxu0
    %v732 = vadd.f32 %v661, %v731
    %v733 = vpop.f32.mrb[0].mxu0
    %734 = vdwg.mxu0
    %vm735 = vcmp.ge.f32.partialorder %v732, 0.0
    %v736 = vmul.f32 %v732, 0.25
    %v737 = vsel %vm735, %v732, %v736
    %v738 = vlaneseq
    %v739 = vshrl.u32 %v738, 7
    %v740 = vsub.s32 1, %v739
    %v741 = vrot.slane %v657, %v740
    %v742 = vmul.f32 %v737, %v741
    %v743 = vlaneseq
    %v744 = vshrl.u32 %v743, 7
    %v745 = vsub.s32 2, %v744
    %v746 = vrot.slane %v657, %v745
    %v747 = vadd.f32 %v742, %v746
    %v748 = vld [vmem:[%s1] sm:$0xff]
    %v749 = vld [vmem:[#allocation12] sm:$0xff]
    %v750 = vld [vmem:[#allocation12 + $0x8] sm:$0xff]
    %v751 = vld [vmem:[#allocation12 + $0x10] sm:$0xff]
    %v752 = vld [vmem:[#allocation12 + $0x18] sm:$0xff]
    %v753 = vld [vmem:[#allocation12 + $0x20] sm:$0xff]
    %v754 = vld [vmem:[#allocation12 + $0x28] sm:$0xff]
    %v755 = vld [vmem:[#allocation12 + $0x30] sm:$0xff]
    %v756 = vld [vmem:[#allocation12 + $0x38] sm:$0xff]
    %v757 = vld [vmem:[#allocation12 + $0x40] sm:$0xff]
    %v758 = vld [vmem:[#allocation12 + $0x48] sm:$0xff]
    %v759 = vld [vmem:[#allocation12 + $0x50] sm:$0xff]
    %v760 = vld [vmem:[#allocation12 + $0x58] sm:$0xff]
    %v761 = vld [vmem:[#allocation13] sm:$0x77]
    %v763 = vlaneseq
    %v764 = vshrl.u32 %v763, 7
    %v765 = vsub.s32 0, %v764
    %v766 = vrot.slane %v761, %v765
    %v767 = vlaneseq
    %v768 = vshrl.u32 %v767, 7
    %v769 = vsub.s32 4, %v768
    %v770 = vrot.slane %v761, %v769
    %v773 = vlaneseq
    %v774 = vshrl.u32 %v773, 7
    %v775 = vsub.s32 0, %v774
    %v776 = vrot.slane %v766, %v775
    %v777 = vlaneseq
    %v778 = vshrl.u32 %v777, 7
    %v779 = vsub.s32 0, %v778
    %v780 = vrot.slane %v770, %v779
    %vm781 = vcmask 392192
    %v783 = vsel %vm781, %v748, 0
    %785 = vmatprep.subr.mxu0 %v750
    %786 = vmatpush1.msra.mxu0 %v749
    %787 = vmatprep.subr.mxu0 %v752
    %788 = vmatpush1.msra.mxu0 %v751
    %789 = vmatprep.subr.mxu0 %v754
    %790 = vmatpush1.msra.mxu0 %v753
    %791 = vmatprep.subr.mxu0 %v756
    %792 = vmatpush1.msra.mxu0 %v755
    %793 = vmatprep.subr.mxu0 %v758
    %794 = vmatpush1.msra.mxu0 %v757
    %795 = vmatprep.subr.mxu0 %v760
    %796 = vmatpush1.msra.mxu0 %v759
    %797 = vmatprep.subr.mxu0 0.0
    %798 = vmatpush1.msra.mxu0 0.0
    %799 = vmatprep.subr.mxu0 0.0
    %800 = vmatpush1.msra.mxu0 0.0
    %801 = vmatprep.subr.mxu0 0.0
    %802 = vmatpush1.msra.mxu0 0.0
    %803 = vmatprep.subr.mxu0 0.0
    %804 = vmatpush1.msra.mxu0 0.0
    %805 = vmatprep.subr.mxu0 0.0
    %806 = vmatpush1.msra.mxu0 0.0
    %807 = vmatprep.subr.mxu0 0.0
    %808 = vmatpush1.msra.mxu0 0.0
    %809 = vmatprep.subr.mxu0 0.0
    %810 = vmatpush1.msra.mxu0 0.0
    %811 = vmatprep.subr.mxu0 0.0
    %812 = vmatpush1.msra.mxu0 0.0
    %813 = vmatprep.subr.mxu0 0.0
    %814 = vmatpush1.msra.mxu0 0.0
    %815 = vmatprep.subr.mxu0 0.0
    %816 = vmatpush1.msra.mxu0 0.0
    %817 = vmatprep.subr.mxu0 0.0
    %818 = vmatpush1.msra.mxu0 0.0
    %819 = vmatprep.subr.mxu0 0.0
    %820 = vmatpush1.msra.mxu0 0.0
    %821 = vmatprep.subr.mxu0 0.0
    %822 = vmatpush1.msra.mxu0 0.0
    %823 = vmatprep.subr.mxu0 0.0
    %824 = vmatpush1.msra.mxu0 0.0
    %825 = vmatprep.subr.mxu0 0.0
    %826 = vmatpush1.msra.mxu0 0.0
    %827 = vmatprep.subr.mxu0 0.0
    %828 = vmatpush1.msra.mxu0 0.0
    %829 = vmatprep.subr.mxu0 0.0
    %830 = vmatpush1.msra.mxu0 0.0
    %831 = vmatprep.subr.mxu0 0.0
    %832 = vmatpush1.msra.mxu0 0.0
    %833 = vmatprep.subr.mxu0 0.0
    %834 = vmatpush1.msra.mxu0 0.0
    %835 = vmatprep.subr.mxu0 0.0
    %836 = vmatpush1.msra.mxu0 0.0
    %837 = vmatprep.subr.mxu0 0.0
    %838 = vmatpush1.msra.mxu0 0.0
    %839 = vmatprep.subr.mxu0 0.0
    %840 = vmatpush1.msra.mxu0 0.0
    %841 = vmatprep.subr.mxu0 0.0
    %842 = vmatpush1.msra.mxu0 0.0
    %843 = vmatprep.subr.mxu0 0.0
    %844 = vmatpush1.msra.mxu0 0.0
    %845 = vmatprep.subr.mxu0 0.0
    %846 = vmatpush1.msra.mxu0 0.0
    %847 = vmatprep.subr.mxu0 0.0
    %848 = vmatpush1.msra.mxu0 0.0
    %849 = vmatprep.mubr.f32.mxu0 0.0
    %850 = vmatmul.mubr.f32.gmra.mrb[0].mxu0 %v783
    %v851 = vpop.f32.mrb[0].mxu0
    %v852 = vadd.f32 %v776, %v851
    %v853 = vpop.f32.mrb[0].mxu0
    %v854 = vadd.f32 %v780, %v853
    %855 = vdwg.mxu0
    %vm856 = vcmp.ge.f32.partialorder %v852, 0.0
    %vm857 = vcmp.ge.f32.partialorder %v854, 0.0
    %v858 = vmul.f32 %v852, 0.25
    %v859 = vmul.f32 %v854, 0.25
    %v860 = vsel %vm856, %v852, %v858
    %v861 = vsel %vm857, %v854, %v859
    %v862 = vlaneseq
    %v863 = vshrl.u32 %v862, 7
    %v864 = vsub.s32 1, %v863
    %v865 = vrot.slane %v761, %v864
    %v866 = vlaneseq
    %v867 = vshrl.u32 %v866, 7
    %v868 = vsub.s32 5, %v867
    %v869 = vrot.slane %v761, %v868
    %v872 = vlaneseq
    %v873 = vshrl.u32 %v872, 7
    %v874 = vsub.s32 1, %v873
    %v875 = vrot.slane %v865, %v874
    %v876 = vlaneseq
    %v877 = vshrl.u32 %v876, 7
    %v878 = vsub.s32 1, %v877
    %v879 = vrot.slane %v869, %v878
    %v880 = vmul.f32 %v860, %v875
    %v881 = vmul.f32 %v861, %v879
    %v882 = vlaneseq
    %v883 = vshrl.u32 %v882, 7
    %v884 = vsub.s32 2, %v883
    %v885 = vrot.slane %v761, %v884
    %v886 = vlaneseq
    %v887 = vshrl.u32 %v886, 7
    %v888 = vsub.s32 6, %v887
    %v889 = vrot.slane %v761, %v888
    %v892 = vlaneseq
    %v893 = vshrl.u32 %v892, 7
    %v894 = vsub.s32 2, %v893
    %v895 = vrot.slane %v885, %v894
    %v896 = vlaneseq
    %v897 = vshrl.u32 %v896, 7
    %v898 = vsub.s32 2, %v897
    %v899 = vrot.slane %v889, %v898
    %v900 = vadd.f32 %v880, %v895
    %v901 = vadd.f32 %v881, %v899
    %v902 = vld [vmem:[#allocation15] sm:$0xff]
    %v903 = vld [vmem:[#allocation15 + $0x8] sm:$0xff]
    %v904 = vld [vmem:[#allocation15 + $0x10] sm:$0xff]
    %v905 = vld [vmem:[#allocation15 + $0x18] sm:$0xff]
    %v906 = vld [vmem:[#allocation15 + $0x20] sm:$0xff]
    %v907 = vld [vmem:[#allocation15 + $0x28] sm:$0xff]
    %v908 = vld [vmem:[#allocation15 + $0x30] sm:$0xff]
    %v909 = vld [vmem:[#allocation15 + $0x38] sm:$0xff]
    %v910 = vld [vmem:[#allocation15 + $0x40] sm:$0xff]
    %v911 = vld [vmem:[#allocation15 + $0x48] sm:$0xff]
    %v912 = vld [vmem:[#allocation15 + $0x50] sm:$0xff]
    %v913 = vld [vmem:[#allocation15 + $0x58] sm:$0xff]
    %v914 = vld [vmem:[#allocation15 + $0x60] sm:$0xff]
    %v915 = vld [vmem:[#allocation15 + $0x68] sm:$0xff]
    %v916 = vld [vmem:[#allocation15 + $0x70] sm:$0xff]
    %v917 = vld [vmem:[#allocation15 + $0x78] sm:$0xff]
    %v918 = vld [vmem:[#allocation15 + $0x80] sm:$0xff]
    %v919 = vld [vmem:[#allocation15 + $0x88] sm:$0xff]
    %v920 = vld [vmem:[#allocation15 + $0x90] sm:$0xff]
    %v921 = vld [vmem:[#allocation15 + $0x98] sm:$0xff]
    %v922 = vld [vmem:[#allocation15 + $0xa0] sm:$0xff]
    %v923 = vld [vmem:[#allocation15 + $0xa8] sm:$0xff]
    %v924 = vld [vmem:[#allocation15 + $0xb0] sm:$0xff]
    %v925 = vld [vmem:[#allocation15 + $0xb8] sm:$0xff]
    %v926 = vld [vmem:[#allocation15 + $0xc0] sm:$0xff]
    %v927 = vld [vmem:[#allocation15 + $0xc8] sm:$0xff]
    %v928 = vld [vmem:[#allocation15 + $0xd0] sm:$0xff]
    %v929 = vld [vmem:[#allocation15 + $0xd8] sm:$0xff]
    %v930 = vld [vmem:[#allocation15 + $0xe0] sm:$0xff]
    %v931 = vld [vmem:[#allocation15 + $0xe8] sm:$0xff]
    %v932 = vld [vmem:[#allocation15 + $0xf0] sm:$0xff]
    %v933 = vld [vmem:[#allocation15 + $0xf8] sm:$0xff]
    %v934 = vld [vmem:[#allocation15 + $0x100] sm:$0xff]
    %v935 = vld [vmem:[#allocation15 + $0x108] sm:$0xff]
    %v936 = vld [vmem:[#allocation15 + $0x110] sm:$0xff]
    %v937 = vld [vmem:[#allocation15 + $0x118] sm:$0xff]
    %v938 = vld [vmem:[#allocation15 + $0x120] sm:$0xff]
    %v939 = vld [vmem:[#allocation15 + $0x128] sm:$0xff]
    %v940 = vld [vmem:[#allocation15 + $0x130] sm:$0xff]
    %v941 = vld [vmem:[#allocation15 + $0x138] sm:$0xff]
    %v942 = vld [vmem:[#allocation15 + $0x140] sm:$0xff]
    %v943 = vld [vmem:[#allocation15 + $0x148] sm:$0xff]
    %v944 = vld [vmem:[#allocation15 + $0x150] sm:$0xff]
    %v945 = vld [vmem:[#allocation15 + $0x158] sm:$0xff]
    %v946 = vld [vmem:[#allocation15 + $0x160] sm:$0xff]
    %v947 = vld [vmem:[#allocation15 + $0x168] sm:$0xff]
    %v948 = vld [vmem:[#allocation15 + $0x170] sm:$0xff]
    %v949 = vld [vmem:[#allocation15 + $0x178] sm:$0xff]
    %v950 = vld [vmem:[#allocation15 + $0x180] sm:$0xff]
    %v951 = vld [vmem:[#allocation15 + $0x188] sm:$0xff]
    %v952 = vld [vmem:[#allocation16] sm:$0x77]
    %v954 = vlaneseq
    %v955 = vshrl.u32 %v954, 7
    %v956 = vsub.s32 0, %v955
    %v957 = vrot.slane %v952, %v956
    %v958 = vlaneseq
    %v959 = vshrl.u32 %v958, 7
    %v960 = vsub.s32 4, %v959
    %v961 = vrot.slane %v952, %v960
    %v964 = vlaneseq
    %v965 = vshrl.u32 %v964, 7
    %v966 = vsub.s32 0, %v965
    %v967 = vrot.slane %v957, %v966
    %v968 = vlaneseq
    %v969 = vshrl.u32 %v968, 7
    %v970 = vsub.s32 0, %v969
    %v971 = vrot.slane %v961, %v970
    %v973 = vsel %vm557, %v901, 0
    %975 = vmatprep.subr.mxu0 %v903
    %976 = vmatpush1.msra.mxu0 %v902
    %977 = vmatprep.subr.mxu0 %v905
    %978 = vmatpush1.msra.mxu0 %v904
    %979 = vmatprep.subr.mxu0 %v907
    %980 = vmatpush1.msra.mxu0 %v906
    %981 = vmatprep.subr.mxu0 %v909
    %982 = vmatpush1.msra.mxu0 %v908
    %983 = vmatprep.subr.mxu0 %v911
    %984 = vmatpush1.msra.mxu0 %v910
    %985 = vmatprep.subr.mxu0 %v913
    %986 = vmatpush1.msra.mxu0 %v912
    %987 = vmatprep.subr.mxu0 %v915
    %988 = vmatpush1.msra.mxu0 %v914
    %989 = vmatprep.subr.mxu0 %v917
    %990 = vmatpush1.msra.mxu0 %v916
    %991 = vmatprep.subr.mxu0 %v919
    %992 = vmatpush1.msra.mxu0 %v918
    %993 = vmatprep.subr.mxu0 %v921
    %994 = vmatpush1.msra.mxu0 %v920
    %995 = vmatprep.subr.mxu0 %v923
    %996 = vmatpush1.msra.mxu0 %v922
    %997 = vmatprep.subr.mxu0 %v925
    %998 = vmatpush1.msra.mxu0 %v924
    %999 = vmatprep.subr.mxu0 %v927
    %1000 = vmatpush1.msra.mxu0 %v926
    %1001 = vmatprep.subr.mxu0 %v929
    %1002 = vmatpush1.msra.mxu0 %v928
    %1003 = vmatprep.subr.mxu0 %v931
    %1004 = vmatpush1.msra.mxu0 %v930
    %1005 = vmatprep.subr.mxu0 %v933
    %1006 = vmatpush1.msra.mxu0 %v932
    %1007 = vmatprep.subr.mxu0 %v935
    %1008 = vmatpush1.msra.mxu0 %v934
    %1009 = vmatprep.subr.mxu0 %v937
    %1010 = vmatpush1.msra.mxu0 %v936
    %1011 = vmatprep.subr.mxu0 %v939
    %1012 = vmatpush1.msra.mxu0 %v938
    %1013 = vmatprep.subr.mxu0 %v941
    %1014 = vmatpush1.msra.mxu0 %v940
    %1015 = vmatprep.subr.mxu0 %v943
    %1016 = vmatpush1.msra.mxu0 %v942
    %1017 = vmatprep.subr.mxu0 %v945
    %1018 = vmatpush1.msra.mxu0 %v944
    %1019 = vmatprep.subr.mxu0 %v947
    %1020 = vmatpush1.msra.mxu0 %v946
    %1021 = vmatprep.subr.mxu0 %v949
    %1022 = vmatpush1.msra.mxu0 %v948
    %1023 = vmatprep.subr.mxu0 %v951
    %1024 = vmatpush1.msra.mxu0 %v950
    %1025 = vmatprep.subr.mxu0 0.0
    %1026 = vmatpush1.msra.mxu0 0.0
    %1027 = vmatprep.subr.mxu0 0.0
    %1028 = vmatpush1.msra.mxu0 0.0
    %1029 = vmatprep.subr.mxu0 0.0
    %1030 = vmatpush1.msra.mxu0 0.0
    %1031 = vmatprep.subr.mxu0 0.0
    %1032 = vmatpush1.msra.mxu0 0.0
    %1033 = vmatprep.subr.mxu0 0.0
    %1034 = vmatpush1.msra.mxu0 0.0
    %1035 = vmatprep.subr.mxu0 0.0
    %1036 = vmatpush1.msra.mxu0 0.0
    %1037 = vmatprep.subr.mxu0 0.0
    %1038 = vmatpush1.msra.mxu0 0.0
    %1039 = vmatprep.mubr.f32.mxu0 %v973
    %1040 = vmatmul.mubr.f32.gmra.mrb[0].mxu0 %v900
    %v1041 = vpop.f32.mrb[0].mxu0
    %v1042 = vadd.f32 %v967, %v1041
    %v1043 = vpop.f32.mrb[0].mxu0
    %v1044 = vadd.f32 %v971, %v1043
    %1045 = vdwg.mxu0
    %vm1046 = vcmp.ge.f32.partialorder %v1042, 0.0
    %vm1047 = vcmp.ge.f32.partialorder %v1044, 0.0
    %v1048 = vmul.f32 %v1042, 0.25
    %v1049 = vmul.f32 %v1044, 0.25
    %v1050 = vsel %vm1046, %v1042, %v1048
    %v1051 = vsel %vm1047, %v1044, %v1049
    %v1052 = vlaneseq
    %v1053 = vshrl.u32 %v1052, 7
    %v1054 = vsub.s32 1, %v1053
    %v1055 = vrot.slane %v952, %v1054
    %v1056 = vlaneseq
    %v1057 = vshrl.u32 %v1056, 7
    %v1058 = vsub.s32 5, %v1057
    %v1059 = vrot.slane %v952, %v1058
    %v1062 = vlaneseq
    %v1063 = vshrl.u32 %v1062, 7
    %v1064 = vsub.s32 1, %v1063
    %v1065 = vrot.slane %v1055, %v1064
    %v1066 = vlaneseq
    %v1067 = vshrl.u32 %v1066, 7
    %v1068 = vsub.s32 1, %v1067
    %v1069 = vrot.slane %v1059, %v1068
    %v1070 = vmul.f32 %v1050, %v1065
    %v1071 = vmul.f32 %v1051, %v1069
    %v1072 = vlaneseq
    %v1073 = vshrl.u32 %v1072, 7
    %v1074 = vsub.s32 2, %v1073
    %v1075 = vrot.slane %v952, %v1074
    %v1076 = vlaneseq
    %v1077 = vshrl.u32 %v1076, 7
    %v1078 = vsub.s32 6, %v1077
    %v1079 = vrot.slane %v952, %v1078
    %v1082 = vlaneseq
    %v1083 = vshrl.u32 %v1082, 7
    %v1084 = vsub.s32 2, %v1083
    %v1085 = vrot.slane %v1075, %v1084
    %v1086 = vlaneseq
    %v1087 = vshrl.u32 %v1086, 7
    %v1088 = vsub.s32 2, %v1087
    %v1089 = vrot.slane %v1079, %v1088
    %v1090 = vadd.f32 %v1070, %v1085
    %v1091 = vadd.f32 %v1071, %v1089
    %v1092 = vld [vmem:[#allocation18] sm:$0xff]
    %v1093 = vld [vmem:[#allocation18 + $0x8] sm:$0xff]
    %v1094 = vld [vmem:[#allocation18 + $0x10] sm:$0xff]
    %v1095 = vld [vmem:[#allocation18 + $0x18] sm:$0xff]
    %v1096 = vld [vmem:[#allocation18 + $0x20] sm:$0xff]
    %v1097 = vld [vmem:[#allocation18 + $0x28] sm:$0xff]
    %v1098 = vld [vmem:[#allocation18 + $0x30] sm:$0xff]
    %v1099 = vld [vmem:[#allocation18 + $0x38] sm:$0xff]
    %v1100 = vld [vmem:[#allocation18 + $0x40] sm:$0xff]
    %v1101 = vld [vmem:[#allocation18 + $0x48] sm:$0xff]
    %v1102 = vld [vmem:[#allocation18 + $0x50] sm:$0xff]
    %v1103 = vld [vmem:[#allocation18 + $0x58] sm:$0xff]
    %v1104 = vld [vmem:[#allocation18 + $0x60] sm:$0xff]
    %v1105 = vld [vmem:[#allocation18 + $0x68] sm:$0xff]
    %v1106 = vld [vmem:[#allocation18 + $0x70] sm:$0xff]
    %v1107 = vld [vmem:[#allocation18 + $0x78] sm:$0xff]
    %v1108 = vld [vmem:[#allocation18 + $0x80] sm:$0xff]
    %v1109 = vld [vmem:[#allocation18 + $0x88] sm:$0xff]
    %v1110 = vld [vmem:[#allocation18 + $0x90] sm:$0xff]
    %v1111 = vld [vmem:[#allocation18 + $0x98] sm:$0xff]
    %v1112 = vld [vmem:[#allocation18 + $0xa0] sm:$0xff]
    %v1113 = vld [vmem:[#allocation18 + $0xa8] sm:$0xff]
    %v1114 = vld [vmem:[#allocation18 + $0xb0] sm:$0xff]
    %v1115 = vld [vmem:[#allocation18 + $0xb8] sm:$0xff]
    %v1116 = vld [vmem:[#allocation18 + $0xc0] sm:$0xff]
    %v1117 = vld [vmem:[#allocation19] sm:$0x7]
    %v1118 = vlaneseq
    %v1119 = vshrl.u32 %v1118, 7
    %v1120 = vsub.s32 0, %v1119
    %v1121 = vrot.slane %v1117, %v1120
    %v1123 = vsel %vm557, %v1091, 0
    %1125 = vmatprep.subr.mxu0 0.0
    %1126 = vmatpush1.msra.mxu0 %v1092
    %1127 = vmatprep.subr.mxu0 0.0
    %1128 = vmatpush1.msra.mxu0 %v1093
    %1129 = vmatprep.subr.mxu0 0.0
    %1130 = vmatpush1.msra.mxu0 %v1094
    %1131 = vmatprep.subr.mxu0 0.0
    %1132 = vmatpush1.msra.mxu0 %v1095
    %1133 = vmatprep.subr.mxu0 0.0
    %1134 = vmatpush1.msra.mxu0 %v1096
    %1135 = vmatprep.subr.mxu0 0.0
    %1136 = vmatpush1.msra.mxu0 %v1097
    %1137 = vmatprep.subr.mxu0 0.0
    %1138 = vmatpush1.msra.mxu0 %v1098
    %1139 = vmatprep.subr.mxu0 0.0
    %1140 = vmatpush1.msra.mxu0 %v1099
    %1141 = vmatprep.subr.mxu0 0.0
    %1142 = vmatpush1.msra.mxu0 %v1100
    %1143 = vmatprep.subr.mxu0 0.0
    %1144 = vmatpush1.msra.mxu0 %v1101
    %1145 = vmatprep.subr.mxu0 0.0
    %1146 = vmatpush1.msra.mxu0 %v1102
    %1147 = vmatprep.subr.mxu0 0.0
    %1148 = vmatpush1.msra.mxu0 %v1103
    %1149 = vmatprep.subr.mxu0 0.0
    %1150 = vmatpush1.msra.mxu0 %v1104
    %1151 = vmatprep.subr.mxu0 0.0
    %1152 = vmatpush1.msra.mxu0 %v1105
    %1153 = vmatprep.subr.mxu0 0.0
    %1154 = vmatpush1.msra.mxu0 %v1106
    %1155 = vmatprep.subr.mxu0 0.0
    %1156 = vmatpush1.msra.mxu0 %v1107
    %1157 = vmatprep.subr.mxu0 0.0
    %1158 = vmatpush1.msra.mxu0 %v1108
    %1159 = vmatprep.subr.mxu0 0.0
    %1160 = vmatpush1.msra.mxu0 %v1109
    %1161 = vmatprep.subr.mxu0 0.0
    %1162 = vmatpush1.msra.mxu0 %v1110
    %1163 = vmatprep.subr.mxu0 0.0
    %1164 = vmatpush1.msra.mxu0 %v1111
    %1165 = vmatprep.subr.mxu0 0.0
    %1166 = vmatpush1.msra.mxu0 %v1112
    %1167 = vmatprep.subr.mxu0 0.0
    %1168 = vmatpush1.msra.mxu0 %v1113
    %1169 = vmatprep.subr.mxu0 0.0
    %1170 = vmatpush1.msra.mxu0 %v1114
    %1171 = vmatprep.subr.mxu0 0.0
    %1172 = vmatpush1.msra.mxu0 %v1115
    %1173 = vmatprep.subr.mxu0 0.0
    %1174 = vmatpush1.msra.mxu0 %v1116
    %1175 = vmatprep.subr.mxu0 0.0
    %1176 = vmatpush1.msra.mxu0 0.0
    %1177 = vmatprep.subr.mxu0 0.0
    %1178 = vmatpush1.msra.mxu0 0.0
    %1179 = vmatprep.subr.mxu0 0.0
    %1180 = vmatpush1.msra.mxu0 0.0
    %1181 = vmatprep.subr.mxu0 0.0
    %1182 = vmatpush1.msra.mxu0 0.0
    %1183 = vmatprep.subr.mxu0 0.0
    %1184 = vmatpush1.msra.mxu0 0.0
    %1185 = vmatprep.subr.mxu0 0.0
    %1186 = vmatpush1.msra.mxu0 0.0
    %1187 = vmatprep.subr.mxu0 0.0
    %1188 = vmatpush1.msra.mxu0 0.0
    %1189 = vmatprep.mubr.f32.mxu0 %v1123
    %1190 = vmatmul.mubr.f32.gmra.mrb[0].mxu0 %v1090
    %v1191 = vpop.f32.mrb[0].mxu0
    %v1192 = vadd.f32 %v1121, %v1191
    %v1193 = vpop.f32.mrb[0].mxu0
    %1194 = vdwg.mxu0
    %vm1195 = vcmp.ge.f32.partialorder %v1192, 0.0
    %v1196 = vmul.f32 %v1192, 0.25
    %v1197 = vsel %vm1195, %v1192, %v1196
    %v1198 = vlaneseq
    %v1199 = vshrl.u32 %v1198, 7
    %v1200 = vsub.s32 1, %v1199
    %v1201 = vrot.slane %v1117, %v1200
    %v1202 = vmul.f32 %v1197, %v1201
    %v1203 = vlaneseq
    %v1204 = vshrl.u32 %v1203, 7
    %v1205 = vsub.s32 2, %v1204
    %v1206 = vrot.slane %v1117, %v1205
    %v1207 = vadd.f32 %v1202, %v1206
    %v1208 = vld [vmem:[%s2] sm:$0xff]
    %v1209 = vld [vmem:[%s15] sm:$0xff]
    %v1210 = vld [vmem:[%s15 + $0x8] sm:$0xff]
    %v1211 = vld [vmem:[%s15 + $0x10] sm:$0xff]
    %v1212 = vld [vmem:[%s15 + $0x18] sm:$0xff]
    %v1213 = vld [vmem:[%s15 + $0x20] sm:$0xff]
    %v1214 = vld [vmem:[%s15 + $0x28] sm:$0xff]
    %v1215 = vld [vmem:[%s15 + $0x30] sm:$0xff]
    %v1216 = vld [vmem:[%s15 + $0x38] sm:$0xff]
    %v1217 = vld [vmem:[#allocation21] sm:$0x77]
    %v1219 = vlaneseq
    %v1220 = vshrl.u32 %v1219, 7
    %v1221 = vsub.s32 0, %v1220
    %v1222 = vrot.slane %v1217, %v1221
    %v1223 = vlaneseq
    %v1224 = vshrl.u32 %v1223, 7
    %v1225 = vsub.s32 4, %v1224
    %v1226 = vrot.slane %v1217, %v1225
    %v1229 = vlaneseq
    %v1230 = vshrl.u32 %v1229, 7
    %v1231 = vsub.s32 0, %v1230
    %v1232 = vrot.slane %v1222, %v1231
    %v1233 = vlaneseq
    %v1234 = vshrl.u32 %v1233, 7
    %v1235 = vsub.s32 0, %v1234
    %v1236 = vrot.slane %v1226, %v1235
    %vm1237 = vcmask 261120
    %v1239 = vsel %vm1237, %v1208, 0
    %1241 = vmatprep.subr.mxu0 %v1210
    %1242 = vmatpush1.msra.mxu0 %v1209
    %1243 = vmatprep.subr.mxu0 %v1212
    %1244 = vmatpush1.msra.mxu0 %v1211
    %1245 = vmatprep.subr.mxu0 %v1214
    %1246 = vmatpush1.msra.mxu0 %v1213
    %1247 = vmatprep.subr.mxu0 %v1216
    %1248 = vmatpush1.msra.mxu0 %v1215
    %1249 = vmatprep.subr.mxu0 0.0
    %1250 = vmatpush1.msra.mxu0 0.0
    %1251 = vmatprep.subr.mxu0 0.0
    %1252 = vmatpush1.msra.mxu0 0.0
    %1253 = vmatprep.subr.mxu0 0.0
    %1254 = vmatpush1.msra.mxu0 0.0
    %1255 = vmatprep.subr.mxu0 0.0
    %1256 = vmatpush1.msra.mxu0 0.0
    %1257 = vmatprep.subr.mxu0 0.0
    %1258 = vmatpush1.msra.mxu0 0.0
    %1259 = vmatprep.subr.mxu0 0.0
    %1260 = vmatpush1.msra.mxu0 0.0
    %1261 = vmatprep.subr.mxu0 0.0
    %1262 = vmatpush1.msra.mxu0 0.0
    %1263 = vmatprep.subr.mxu0 0.0
    %1264 = vmatpush1.msra.mxu0 0.0
    %1265 = vmatprep.subr.mxu0 0.0
    %1266 = vmatpush1.msra.mxu0 0.0
    %1267 = vmatprep.subr.mxu0 0.0
    %1268 = vmatpush1.msra.mxu0 0.0
    %1269 = vmatprep.subr.mxu0 0.0
    %1270 = vmatpush1.msra.mxu0 0.0
    %1271 = vmatprep.subr.mxu0 0.0
    %1272 = vmatpush1.msra.mxu0 0.0
    %1273 = vmatprep.subr.mxu0 0.0
    %1274 = vmatpush1.msra.mxu0 0.0
    %1275 = vmatprep.subr.mxu0 0.0
    %1276 = vmatpush1.msra.mxu0 0.0
    %1277 = vmatprep.subr.mxu0 0.0
    %1278 = vmatpush1.msra.mxu0 0.0
    %1279 = vmatprep.subr.mxu0 0.0
    %1280 = vmatpush1.msra.mxu0 0.0
    %1281 = vmatprep.subr.mxu0 0.0
    %1282 = vmatpush1.msra.mxu0 0.0
    %1283 = vmatprep.subr.mxu0 0.0
    %1284 = vmatpush1.msra.mxu0 0.0
    %1285 = vmatprep.subr.mxu0 0.0
    %1286 = vmatpush1.msra.mxu0 0.0
    %1287 = vmatprep.subr.mxu0 0.0
    %1288 = vmatpush1.msra.mxu0 0.0
    %1289 = vmatprep.subr.mxu0 0.0
    %1290 = vmatpush1.msra.mxu0 0.0
    %1291 = vmatprep.subr.mxu0 0.0
    %1292 = vmatpush1.msra.mxu0 0.0
    %1293 = vmatprep.subr.mxu0 0.0
    %1294 = vmatpush1.msra.mxu0 0.0
    %1295 = vmatprep.subr.mxu0 0.0
    %1296 = vmatpush1.msra.mxu0 0.0
    %1297 = vmatprep.subr.mxu0 0.0
    %1298 = vmatpush1.msra.mxu0 0.0
    %1299 = vmatprep.subr.mxu0 0.0
    %1300 = vmatpush1.msra.mxu0 0.0
    %1301 = vmatprep.subr.mxu0 0.0
    %1302 = vmatpush1.msra.mxu0 0.0
    %1303 = vmatprep.subr.mxu0 0.0
    %1304 = vmatpush1.msra.mxu0 0.0
    %1305 = vmatprep.mubr.f32.mxu0 0.0
    %1306 = vmatmul.mubr.f32.gmra.mrb[0].mxu0 %v1239
    %v1307 = vpop.f32.mrb[0].mxu0
    %v1308 = vadd.f32 %v1232, %v1307
    %v1309 = vpop.f32.mrb[0].mxu0
    %v1310 = vadd.f32 %v1236, %v1309
    %1311 = vdwg.mxu0
    %vm1312 = vcmp.ge.f32.partialorder %v1308, 0.0
    %vm1313 = vcmp.ge.f32.partialorder %v1310, 0.0
    %v1314 = vmul.f32 %v1308, 0.25
    %v1315 = vmul.f32 %v1310, 0.25
    %v1316 = vsel %vm1312, %v1308, %v1314
    %v1317 = vsel %vm1313, %v1310, %v1315
    %v1318 = vlaneseq
    %v1319 = vshrl.u32 %v1318, 7
    %v1320 = vsub.s32 1, %v1319
    %v1321 = vrot.slane %v1217, %v1320
    %v1322 = vlaneseq
    %v1323 = vshrl.u32 %v1322, 7
    %v1324 = vsub.s32 5, %v1323
    %v1325 = vrot.slane %v1217, %v1324
    %v1328 = vlaneseq
    %v1329 = vshrl.u32 %v1328, 7
    %v1330 = vsub.s32 1, %v1329
    %v1331 = vrot.slane %v1321, %v1330
    %v1332 = vlaneseq
    %v1333 = vshrl.u32 %v1332, 7
    %v1334 = vsub.s32 1, %v1333
    %v1335 = vrot.slane %v1325, %v1334
    %v1336 = vmul.f32 %v1316, %v1331
    %v1337 = vmul.f32 %v1317, %v1335
    %v1338 = vlaneseq
    %v1339 = vshrl.u32 %v1338, 7
    %v1340 = vsub.s32 2, %v1339
    %v1341 = vrot.slane %v1217, %v1340
    %v1342 = vlaneseq
    %v1343 = vshrl.u32 %v1342, 7
    %v1344 = vsub.s32 6, %v1343
    %v1345 = vrot.slane %v1217, %v1344
    %v1348 = vlaneseq
    %v1349 = vshrl.u32 %v1348, 7
    %v1350 = vsub.s32 2, %v1349
    %v1351 = vrot.slane %v1341, %v1350
    %v1352 = vlaneseq
    %v1353 = vshrl.u32 %v1352, 7
    %v1354 = vsub.s32 2, %v1353
    %v1355 = vrot.slane %v1345, %v1354
    %v1356 = vadd.f32 %v1336, %v1351
    %v1357 = vadd.f32 %v1337, %v1355
    %v1358 = vld [vmem:[#allocation22] sm:$0xff]
    %v1359 = vld [vmem:[#allocation22 + $0x8] sm:$0xff]
    %v1360 = vld [vmem:[#allocation22 + $0x10] sm:$0xff]
    %v1361 = vld [vmem:[#allocation22 + $0x18] sm:$0xff]
    %v1362 = vld [vmem:[#allocation22 + $0x20] sm:$0xff]
    %v1363 = vld [vmem:[#allocation22 + $0x28] sm:$0xff]
    %v1364 = vld [vmem:[#allocation22 + $0x30] sm:$0xff]
    %v1365 = vld [vmem:[#allocation22 + $0x38] sm:$0xff]
    %v1366 = vld [vmem:[#allocation22 + $0x40] sm:$0xff]
    %v1367 = vld [vmem:[#allocation22 + $0x48] sm:$0xff]
    %v1368 = vld [vmem:[#allocation22 + $0x50] sm:$0xff]
    %v1369 = vld [vmem:[#allocation22 + $0x58] sm:$0xff]
    %v1370 = vld [vmem:[#allocation22 + $0x60] sm:$0xff]
    %v1371 = vld [vmem:[#allocation22 + $0x68] sm:$0xff]
    %v1372 = vld [vmem:[#allocation22 + $0x70] sm:$0xff]
    %v1373 = vld [vmem:[#allocation22 + $0x78] sm:$0xff]
    %v1374 = vld [vmem:[#allocation22 + $0x80] sm:$0xff]
    %v1375 = vld [vmem:[#allocation22 + $0x88] sm:$0xff]
    %v1376 = vld [vmem:[#allocation22 + $0x90] sm:$0xff]
    %v1377 = vld [vmem:[#allocation22 + $0x98] sm:$0xff]
    %v1378 = vld [vmem:[#allocation22 + $0xa0] sm:$0xff]
    %v1379 = vld [vmem:[#allocation22 + $0xa8] sm:$0xff]
    %v1380 = vld [vmem:[#allocation22 + $0xb0] sm:$0xff]
    %v1381 = vld [vmem:[#allocation22 + $0xb8] sm:$0xff]
    %v1382 = vld [vmem:[#allocation22 + $0xc0] sm:$0xff]
    %v1383 = vld [vmem:[#allocation22 + $0xc8] sm:$0xff]
    %v1384 = vld [vmem:[#allocation22 + $0xd0] sm:$0xff]
    %v1385 = vld [vmem:[#allocation22 + $0xd8] sm:$0xff]
    %v1386 = vld [vmem:[#allocation22 + $0xe0] sm:$0xff]
    %v1387 = vld [vmem:[#allocation22 + $0xe8] sm:$0xff]
    %v1388 = vld [vmem:[#allocation22 + $0xf0] sm:$0xff]
    %v1389 = vld [vmem:[#allocation22 + $0xf8] sm:$0xff]
    %v1390 = vld [vmem:[#allocation22 + $0x100] sm:$0xff]
    %v1391 = vld [vmem:[#allocation22 + $0x108] sm:$0xff]
    %v1392 = vld [vmem:[#allocation22 + $0x110] sm:$0xff]
    %v1393 = vld [vmem:[#allocation22 + $0x118] sm:$0xff]
    %v1394 = vld [vmem:[#allocation22 + $0x120] sm:$0xff]
    %v1395 = vld [vmem:[#allocation22 + $0x128] sm:$0xff]
    %v1396 = vld [vmem:[#allocation22 + $0x130] sm:$0xff]
    %v1397 = vld [vmem:[#allocation22 + $0x138] sm:$0xff]
    %v1398 = vld [vmem:[#allocation22 + $0x140] sm:$0xff]
    %v1399 = vld [vmem:[#allocation22 + $0x148] sm:$0xff]
    %v1400 = vld [vmem:[#allocation22 + $0x150] sm:$0xff]
    %v1401 = vld [vmem:[#allocation22 + $0x158] sm:$0xff]
    %v1402 = vld [vmem:[#allocation22 + $0x160] sm:$0xff]
    %v1403 = vld [vmem:[#allocation22 + $0x168] sm:$0xff]
    %v1404 = vld [vmem:[#allocation22 + $0x170] sm:$0xff]
    %v1405 = vld [vmem:[#allocation22 + $0x178] sm:$0xff]
    %v1406 = vld [vmem:[#allocation22 + $0x180] sm:$0xff]
    %v1407 = vld [vmem:[#allocation22 + $0x188] sm:$0xff]
    %v1408 = vld [vmem:[#allocation24] sm:$0x77]
    %v1410 = vlaneseq
    %v1411 = vshrl.u32 %v1410, 7
    %v1412 = vsub.s32 0, %v1411
    %v1413 = vrot.slane %v1408, %v1412
    %v1414 = vlaneseq
    %v1415 = vshrl.u32 %v1414, 7
    %v1416 = vsub.s32 4, %v1415
    %v1417 = vrot.slane %v1408, %v1416
    %v1420 = vlaneseq
    %v1421 = vshrl.u32 %v1420, 7
    %v1422 = vsub.s32 0, %v1421
    %v1423 = vrot.slane %v1413, %v1422
    %v1424 = vlaneseq
    %v1425 = vshrl.u32 %v1424, 7
    %v1426 = vsub.s32 0, %v1425
    %v1427 = vrot.slane %v1417, %v1426
    %v1429 = vsel %vm557, %v1357, 0
    %1431 = vmatprep.subr.mxu0 %v1359
    %1432 = vmatpush1.msra.mxu0 %v1358
    %1433 = vmatprep.subr.mxu0 %v1361
    %1434 = vmatpush1.msra.mxu0 %v1360
    %1435 = vmatprep.subr.mxu0 %v1363
    %1436 = vmatpush1.msra.mxu0 %v1362
    %1437 = vmatprep.subr.mxu0 %v1365
    %1438 = vmatpush1.msra.mxu0 %v1364
    %1439 = vmatprep.subr.mxu0 %v1367
    %1440 = vmatpush1.msra.mxu0 %v1366
    %1441 = vmatprep.subr.mxu0 %v1369
    %1442 = vmatpush1.msra.mxu0 %v1368
    %1443 = vmatprep.subr.mxu0 %v1371
    %1444 = vmatpush1.msra.mxu0 %v1370
    %1445 = vmatprep.subr.mxu0 %v1373
    %1446 = vmatpush1.msra.mxu0 %v1372
    %1447 = vmatprep.subr.mxu0 %v1375
    %1448 = vmatpush1.msra.mxu0 %v1374
    %1449 = vmatprep.subr.mxu0 %v1377
    %1450 = vmatpush1.msra.mxu0 %v1376
    %1451 = vmatprep.subr.mxu0 %v1379
    %1452 = vmatpush1.msra.mxu0 %v1378
    %1453 = vmatprep.subr.mxu0 %v1381
    %1454 = vmatpush1.msra.mxu0 %v1380
    %1455 = vmatprep.subr.mxu0 %v1383
    %1456 = vmatpush1.msra.mxu0 %v1382
    %1457 = vmatprep.subr.mxu0 %v1385
    %1458 = vmatpush1.msra.mxu0 %v1384
    %1459 = vmatprep.subr.mxu0 %v1387
    %1460 = vmatpush1.msra.mxu0 %v1386
    %1461 = vmatprep.subr.mxu0 %v1389
    %1462 = vmatpush1.msra.mxu0 %v1388
    %1463 = vmatprep.subr.mxu0 %v1391
    %1464 = vmatpush1.msra.mxu0 %v1390
    %1465 = vmatprep.subr.mxu0 %v1393
    %1466 = vmatpush1.msra.mxu0 %v1392
    %1467 = vmatprep.subr.mxu0 %v1395
    %1468 = vmatpush1.msra.mxu0 %v1394
    %1469 = vmatprep.subr.mxu0 %v1397
    %1470 = vmatpush1.msra.mxu0 %v1396
    %1471 = vmatprep.subr.mxu0 %v1399
    %1472 = vmatpush1.msra.mxu0 %v1398
    %1473 = vmatprep.subr.mxu0 %v1401
    %1474 = vmatpush1.msra.mxu0 %v1400
    %1475 = vmatprep.subr.mxu0 %v1403
    %1476 = vmatpush1.msra.mxu0 %v1402
    %1477 = vmatprep.subr.mxu0 %v1405
    %1478 = vmatpush1.msra.mxu0 %v1404
    %1479 = vmatprep.subr.mxu0 %v1407
    %1480 = vmatpush1.msra.mxu0 %v1406
    %1481 = vmatprep.subr.mxu0 0.0
    %1482 = vmatpush1.msra.mxu0 0.0
    %1483 = vmatprep.subr.mxu0 0.0
    %1484 = vmatpush1.msra.mxu0 0.0
    %1485 = vmatprep.subr.mxu0 0.0
    %1486 = vmatpush1.msra.mxu0 0.0
    %1487 = vmatprep.subr.mxu0 0.0
    %1488 = vmatpush1.msra.mxu0 0.0
    %1489 = vmatprep.subr.mxu0 0.0
    %1490 = vmatpush1.msra.mxu0 0.0
    %1491 = vmatprep.subr.mxu0 0.0
    %1492 = vmatpush1.msra.mxu0 0.0
    %1493 = vmatprep.subr.mxu0 0.0
    %1494 = vmatpush1.msra.mxu0 0.0
    %1495 = vmatprep.mubr.f32.mxu0 %v1429
    %1496 = vmatmul.mubr.f32.gmra.mrb[0].mxu0 %v1356
    %v1497 = vpop.f32.mrb[0].mxu0
    %v1498 = vadd.f32 %v1423, %v1497
    %v1499 = vpop.f32.mrb[0].mxu0
    %v1500 = vadd.f32 %v1427, %v1499
    %1501 = vdwg.mxu0
    %vm1502 = vcmp.ge.f32.partialorder %v1498, 0.0
    %vm1503 = vcmp.ge.f32.partialorder %v1500, 0.0
    %v1504 = vmul.f32 %v1498, 0.25
    %v1505 = vmul.f32 %v1500, 0.25
    %v1506 = vsel %vm1502, %v1498, %v1504
    %v1507 = vsel %vm1503, %v1500, %v1505
    %v1508 = vlaneseq
    %v1509 = vshrl.u32 %v1508, 7
    %v1510 = vsub.s32 1, %v1509
    %v1511 = vrot.slane %v1408, %v1510
    %v1512 = vlaneseq
    %v1513 = vshrl.u32 %v1512, 7
    %v1514 = vsub.s32 5, %v1513
    %v1515 = vrot.slane %v1408, %v1514
    %v1518 = vlaneseq
    %v1519 = vshrl.u32 %v1518, 7
    %v1520 = vsub.s32 1, %v1519
    %v1521 = vrot.slane %v1511, %v1520
    %v1522 = vlaneseq
    %v1523 = vshrl.u32 %v1522, 7
    %v1524 = vsub.s32 1, %v1523
    %v1525 = vrot.slane %v1515, %v1524
    %v1526 = vmul.f32 %v1506, %v1521
    %v1527 = vmul.f32 %v1507, %v1525
    %v1528 = vlaneseq
    %v1529 = vshrl.u32 %v1528, 7
    %v1530 = vsub.s32 2, %v1529
    %v1531 = vrot.slane %v1408, %v1530
    %v1532 = vlaneseq
    %v1533 = vshrl.u32 %v1532, 7
    %v1534 = vsub.s32 6, %v1533
    %v1535 = vrot.slane %v1408, %v1534
    %v1538 = vlaneseq
    %v1539 = vshrl.u32 %v1538, 7
    %v1540 = vsub.s32 2, %v1539
    %v1541 = vrot.slane %v1531, %v1540
    %v1542 = vlaneseq
    %v1543 = vshrl.u32 %v1542, 7
    %v1544 = vsub.s32 2, %v1543
    %v1545 = vrot.slane %v1535, %v1544
    %v1546 = vadd.f32 %v1526, %v1541
    %v1547 = vadd.f32 %v1527, %v1545
    %v1548 = vld [vmem:[#allocation25] sm:$0xff]
    %v1549 = vld [vmem:[#allocation25 + $0x8] sm:$0xff]
    %v1550 = vld [vmem:[#allocation25 + $0x10] sm:$0xff]
    %v1551 = vld [vmem:[#allocation25 + $0x18] sm:$0xff]
    %v1552 = vld [vmem:[#allocation25 + $0x20] sm:$0xff]
    %v1553 = vld [vmem:[#allocation25 + $0x28] sm:$0xff]
    %v1554 = vld [vmem:[#allocation25 + $0x30] sm:$0xff]
    %v1555 = vld [vmem:[#allocation25 + $0x38] sm:$0xff]
    %v1556 = vld [vmem:[#allocation25 + $0x40] sm:$0xff]
    %v1557 = vld [vmem:[#allocation25 + $0x48] sm:$0xff]
    %v1558 = vld [vmem:[#allocation25 + $0x50] sm:$0xff]
    %v1559 = vld [vmem:[#allocation25 + $0x58] sm:$0xff]
    %v1560 = vld [vmem:[#allocation25 + $0x60] sm:$0xff]
    %v1561 = vld [vmem:[#allocation25 + $0x68] sm:$0xff]
    %v1562 = vld [vmem:[#allocation25 + $0x70] sm:$0xff]
    %v1563 = vld [vmem:[#allocation25 + $0x78] sm:$0xff]
    %v1564 = vld [vmem:[#allocation25 + $0x80] sm:$0xff]
    %v1565 = vld [vmem:[#allocation25 + $0x88] sm:$0xff]
    %v1566 = vld [vmem:[#allocation25 + $0x90] sm:$0xff]
    %v1567 = vld [vmem:[#allocation25 + $0x98] sm:$0xff]
    %v1568 = vld [vmem:[#allocation25 + $0xa0] sm:$0xff]
    %v1569 = vld [vmem:[#allocation25 + $0xa8] sm:$0xff]
    %v1570 = vld [vmem:[#allocation25 + $0xb0] sm:$0xff]
    %v1571 = vld [vmem:[#allocation25 + $0xb8] sm:$0xff]
    %v1572 = vld [vmem:[#allocation25 + $0xc0] sm:$0xff]
    %v1573 = vld [vmem:[#allocation27] sm:$0x7]
    %v1574 = vlaneseq
    %v1575 = vshrl.u32 %v1574, 7
    %v1576 = vsub.s32 0, %v1575
    %v1577 = vrot.slane %v1573, %v1576
    %v1579 = vsel %vm557, %v1547, 0
    %1581 = vmatprep.subr.mxu0 0.0
    %1582 = vmatpush1.msra.mxu0 %v1548
    %1583 = vmatprep.subr.mxu0 0.0
    %1584 = vmatpush1.msra.mxu0 %v1549
    %1585 = vmatprep.subr.mxu0 0.0
    %1586 = vmatpush1.msra.mxu0 %v1550
    %1587 = vmatprep.subr.mxu0 0.0
    %1588 = vmatpush1.msra.mxu0 %v1551
    %1589 = vmatprep.subr.mxu0 0.0
    %1590 = vmatpush1.msra.mxu0 %v1552
    %1591 = vmatprep.subr.mxu0 0.0
    %1592 = vmatpush1.msra.mxu0 %v1553
    %1593 = vmatprep.subr.mxu0 0.0
    %1594 = vmatpush1.msra.mxu0 %v1554
    %1595 = vmatprep.subr.mxu0 0.0
    %1596 = vmatpush1.msra.mxu0 %v1555
    %1597 = vmatprep.subr.mxu0 0.0
    %1598 = vmatpush1.msra.mxu0 %v1556
    %1599 = vmatprep.subr.mxu0 0.0
    %1600 = vmatpush1.msra.mxu0 %v1557
    %1601 = vmatprep.subr.mxu0 0.0
    %1602 = vmatpush1.msra.mxu0 %v1558
    %1603 = vmatprep.subr.mxu0 0.0
    %1604 = vmatpush1.msra.mxu0 %v1559
    %1605 = vmatprep.subr.mxu0 0.0
    %1606 = vmatpush1.msra.mxu0 %v1560
    %1607 = vmatprep.subr.mxu0 0.0
    %1608 = vmatpush1.msra.mxu0 %v1561
    %1609 = vmatprep.subr.mxu0 0.0
    %1610 = vmatpush1.msra.mxu0 %v1562
    %1611 = vmatprep.subr.mxu0 0.0
    %1612 = vmatpush1.msra.mxu0 %v1563
    %1613 = vmatprep.subr.mxu0 0.0
    %1614 = vmatpush1.msra.mxu0 %v1564
    %1615 = vmatprep.subr.mxu0 0.0
    %1616 = vmatpush1.msra.mxu0 %v1565
    %1617 = vmatprep.subr.mxu0 0.0
    %1618 = vmatpush1.msra.mxu0 %v1566
    %1619 = vmatprep.subr.mxu0 0.0
    %1620 = vmatpush1.msra.mxu0 %v1567
    %1621 = vmatprep.subr.mxu0 0.0
    %1622 = vmatpush1.msra.mxu0 %v1568
    %1623 = vmatprep.subr.mxu0 0.0
    %1624 = vmatpush1.msra.mxu0 %v1569
    %1625 = vmatprep.subr.mxu0 0.0
    %1626 = vmatpush1.msra.mxu0 %v1570
    %1627 = vmatprep.subr.mxu0 0.0
    %1628 = vmatpush1.msra.mxu0 %v1571
    %1629 = vmatprep.subr.mxu0 0.0
    %1630 = vmatpush1.msra.mxu0 %v1572
    %1631 = vmatprep.subr.mxu0 0.0
    %1632 = vmatpush1.msra.mxu0 0.0
    %1633 = vmatprep.subr.mxu0 0.0
    %1634 = vmatpush1.msra.mxu0 0.0
    %1635 = vmatprep.subr.mxu0 0.0
    %1636 = vmatpush1.msra.mxu0 0.0
    %1637 = vmatprep.subr.mxu0 0.0
    %1638 = vmatpush1.msra.mxu0 0.0
    %1639 = vmatprep.subr.mxu0 0.0
    %1640 = vmatpush1.msra.mxu0 0.0
    %1641 = vmatprep.subr.mxu0 0.0
    %1642 = vmatpush1.msra.mxu0 0.0
    %1643 = vmatprep.subr.mxu0 0.0
    %1644 = vmatpush1.msra.mxu0 0.0
    %1645 = vmatprep.mubr.f32.mxu0 %v1579
    %1646 = vmatmul.mubr.f32.gmra.mrb[0].mxu0 %v1546
    %v1647 = vpop.f32.mrb[0].mxu0
    %v1648 = vadd.f32 %v1577, %v1647
    %v1649 = vpop.f32.mrb[0].mxu0
    %1650 = vdwg.mxu0
    %vm1651 = vcmp.ge.f32.partialorder %v1648, 0.0
    %v1652 = vmul.f32 %v1648, 0.25
    %v1653 = vsel %vm1651, %v1648, %v1652
    %v1654 = vlaneseq
    %v1655 = vshrl.u32 %v1654, 7
    %v1656 = vsub.s32 1, %v1655
    %v1657 = vrot.slane %v1573, %v1656
    %v1658 = vmul.f32 %v1653, %v1657
    %v1659 = vlaneseq
    %v1660 = vshrl.u32 %v1659, 7
    %v1661 = vsub.s32 2, %v1660
    %v1662 = vrot.slane %v1573, %v1661
    %v1663 = vadd.f32 %v1658, %v1662
    %v1664 = vld [vmem:[%s21] sm:$0xff]
    %v1665 = vld [vmem:[%s21 + $0x8] sm:$0xff]
    %v1666 = vld [vmem:[%s21 + $0x10] sm:$0xff]
    %v1667 = vld [vmem:[%s21 + $0x18] sm:$0xff]
    %v1668 = vld [vmem:[%s21 + $0x20] sm:$0xff]
    %v1669 = vld [vmem:[%s21 + $0x28] sm:$0xff]
    %v1670 = vld [vmem:[%s21 + $0x30] sm:$0xff]
    %v1671 = vld [vmem:[%s21 + $0x38] sm:$0xff]
    %v1672 = vld [vmem:[%s21 + $0x40] sm:$0xff]
    %v1673 = vld [vmem:[%s21 + $0x48] sm:$0xff]
    %v1674 = vld [vmem:[%s21 + $0x50] sm:$0xff]
    %v1675 = vld [vmem:[%s21 + $0x58] sm:$0xff]
    %v1676 = vld [vmem:[%s21 + $0x60] sm:$0xf]
    %v1677 = vld [vmem:[#allocation28] sm:$0xff]
    %v1678 = vld [vmem:[#allocation28 + $0x8] sm:$0xff]
    %v1679 = vld [vmem:[#allocation28 + $0x10] sm:$0xff]
    %v1680 = vld [vmem:[#allocation28 + $0x18] sm:$0xff]
    %v1681 = vld [vmem:[#allocation28 + $0x20] sm:$0xff]
    %v1682 = vld [vmem:[#allocation28 + $0x28] sm:$0xff]
    %v1683 = vld [vmem:[#allocation28 + $0x30] sm:$0xff]
    %v1684 = vld [vmem:[#allocation28 + $0x38] sm:$0xff]
    %v1685 = vld [vmem:[#allocation28 + $0x40] sm:$0xff]
    %v1686 = vld [vmem:[#allocation28 + $0x48] sm:$0xff]
    %v1687 = vld [vmem:[#allocation28 + $0x50] sm:$0xff]
    %v1688 = vld [vmem:[#allocation28 + $0x58] sm:$0xff]
    %v1689 = vld [vmem:[#allocation28 + $0x60] sm:$0xf]
    %vm1690 = vcmask 818176
    %v1692 = vsel %vm1690, %v1207, 0
    %vm1694 = vcmask 1043456
    %v1696 = vsel %vm1694, %v1689, 0
    %1698 = vmatprep.subr.mxu0 0.0
    %1699 = vmatpush1.msra.mxu0 %v1677
    %1700 = vmatprep.subr.mxu0 0.0
    %1701 = vmatpush1.msra.mxu0 %v1678
    %1702 = vmatprep.subr.mxu0 0.0
    %1703 = vmatpush1.msra.mxu0 %v1679
    %1704 = vmatprep.subr.mxu0 0.0
    %1705 = vmatpush1.msra.mxu0 %v1680
    %1706 = vmatprep.subr.mxu0 0.0
    %1707 = vmatpush1.msra.mxu0 %v1681
    %1708 = vmatprep.subr.mxu0 0.0
    %1709 = vmatpush1.msra.mxu0 %v1682
    %1710 = vmatprep.subr.mxu0 0.0
    %1711 = vmatpush1.msra.mxu0 %v1683
    %1712 = vmatprep.subr.mxu0 0.0
    %1713 = vmatpush1.msra.mxu0 %v1684
    %1714 = vmatprep.subr.mxu0 0.0
    %1715 = vmatpush1.msra.mxu0 %v1685
    %1716 = vmatprep.subr.mxu0 0.0
    %1717 = vmatpush1.msra.mxu0 %v1686
    %1718 = vmatprep.subr.mxu0 0.0
    %1719 = vmatpush1.msra.mxu0 %v1687
    %1720 = vmatprep.subr.mxu0 0.0
    %1721 = vmatpush1.msra.mxu0 %v1688
    %1722 = vmatprep.subr.mxu0 0.0
    %1723 = vmatpush1.msra.mxu0 %v1696
    %1724 = vmatprep.subr.mxu0 0.0
    %1725 = vmatpush1.msra.mxu0 0.0
    %1726 = vmatprep.subr.mxu0 0.0
    %1727 = vmatpush1.msra.mxu0 0.0
    %1728 = vmatprep.subr.mxu0 0.0
    %1729 = vmatpush1.msra.mxu0 0.0
    %1730 = vmatprep.subr.mxu0 0.0
    %1731 = vmatpush1.msra.mxu0 0.0
    %1732 = vmatprep.subr.mxu0 0.0
    %1733 = vmatpush1.msra.mxu0 0.0
    %1734 = vmatprep.subr.mxu0 0.0
    %1735 = vmatpush1.msra.mxu0 0.0
    %1736 = vmatprep.subr.mxu0 0.0
    %1737 = vmatpush1.msra.mxu0 0.0
    %1738 = vmatprep.subr.mxu0 0.0
    %1739 = vmatpush1.msra.mxu0 0.0
    %1740 = vmatprep.subr.mxu0 0.0
    %1741 = vmatpush1.msra.mxu0 0.0
    %1742 = vmatprep.subr.mxu0 0.0
    %1743 = vmatpush1.msra.mxu0 0.0
    %1744 = vmatprep.subr.mxu0 0.0
    %1745 = vmatpush1.msra.mxu0 0.0
    %1746 = vmatprep.subr.mxu0 0.0
    %1747 = vmatpush1.msra.mxu0 0.0
    %1748 = vmatprep.subr.mxu0 0.0
    %1749 = vmatpush1.msra.mxu0 0.0
    %1750 = vmatprep.subr.mxu0 0.0
    %1751 = vmatpush1.msra.mxu0 0.0
    %1752 = vmatprep.subr.mxu0 0.0
    %1753 = vmatpush1.msra.mxu0 0.0
    %1754 = vmatprep.subr.mxu0 0.0
    %1755 = vmatpush1.msra.mxu0 0.0
    %1756 = vmatprep.subr.mxu0 0.0
    %1757 = vmatpush1.msra.mxu0 0.0
    %1758 = vmatprep.subr.mxu0 0.0
    %1759 = vmatpush1.msra.mxu0 0.0
    %1760 = vmatprep.subr.mxu0 0.0
    %1761 = vmatpush1.msra.mxu0 0.0
    %1762 = vmatprep.mubr.f32.mxu0 0.0
    %1763 = vmatmul.mubr.f32.gmra.mrb[0].mxu0 %v1692
    %v1764 = vpop.f32.mrb[0].mxu0
    %v1765 = vadd.f32 0.0, %v1764
    %v1766 = vpop.f32.mrb[0].mxu0
    %1767 = vdwg.mxu0
    %v1769 = vsel %vm1690, %v747, 0
    %v1772 = vsel %vm1694, %v1676, 0
    %1774 = vmatprep.subr.mxu0 0.0
    %1775 = vmatpush1.msra.mxu0 %v1664
    %1776 = vmatprep.subr.mxu0 0.0
    %1777 = vmatpush1.msra.mxu0 %v1665
    %1778 = vmatprep.subr.mxu0 0.0
    %1779 = vmatpush1.msra.mxu0 %v1666
    %1780 = vmatprep.subr.mxu0 0.0
    %1781 = vmatpush1.msra.mxu0 %v1667
    %1782 = vmatprep.subr.mxu0 0.0
    %1783 = vmatpush1.msra.mxu0 %v1668
    %1784 = vmatprep.subr.mxu0 0.0
    %1785 = vmatpush1.msra.mxu0 %v1669
    %1786 = vmatprep.subr.mxu0 0.0
    %1787 = vmatpush1.msra.mxu0 %v1670
    %1788 = vmatprep.subr.mxu0 0.0
    %1789 = vmatpush1.msra.mxu0 %v1671
    %1790 = vmatprep.subr.mxu0 0.0
    %1791 = vmatpush1.msra.mxu0 %v1672
    %1792 = vmatprep.subr.mxu0 0.0
    %1793 = vmatpush1.msra.mxu0 %v1673
    %1794 = vmatprep.subr.mxu0 0.0
    %1795 = vmatpush1.msra.mxu0 %v1674
    %1796 = vmatprep.subr.mxu0 0.0
    %1797 = vmatpush1.msra.mxu0 %v1675
    %1798 = vmatprep.subr.mxu0 0.0
    %1799 = vmatpush1.msra.mxu0 %v1772
    %1800 = vmatprep.subr.mxu0 0.0
    %1801 = vmatpush1.msra.mxu0 0.0
    %1802 = vmatprep.subr.mxu0 0.0
    %1803 = vmatpush1.msra.mxu0 0.0
    %1804 = vmatprep.subr.mxu0 0.0
    %1805 = vmatpush1.msra.mxu0 0.0
    %1806 = vmatprep.subr.mxu0 0.0
    %1807 = vmatpush1.msra.mxu0 0.0
    %1808 = vmatprep.subr.mxu0 0.0
    %1809 = vmatpush1.msra.mxu0 0.0
    %1810 = vmatprep.subr.mxu0 0.0
    %1811 = vmatpush1.msra.mxu0 0.0
    %1812 = vmatprep.subr.mxu0 0.0
    %1813 = vmatpush1.msra.mxu0 0.0
    %1814 = vmatprep.subr.mxu0 0.0
    %1815 = vmatpush1.msra.mxu0 0.0
    %1816 = vmatprep.subr.mxu0 0.0
    %1817 = vmatpush1.msra.mxu0 0.0
    %1818 = vmatprep.subr.mxu0 0.0
    %1819 = vmatpush1.msra.mxu0 0.0
    %1820 = vmatprep.subr.mxu0 0.0
    %1821 = vmatpush1.msra.mxu0 0.0
    %1822 = vmatprep.subr.mxu0 0.0
    %1823 = vmatpush1.msra.mxu0 0.0
    %1824 = vmatprep.subr.mxu0 0.0
    %1825 = vmatpush1.msra.mxu0 0.0
    %1826 = vmatprep.subr.mxu0 0.0
    %1827 = vmatpush1.msra.mxu0 0.0
    %1828 = vmatprep.subr.mxu0 0.0
    %1829 = vmatpush1.msra.mxu0 0.0
    %1830 = vmatprep.subr.mxu0 0.0
    %1831 = vmatpush1.msra.mxu0 0.0
    %1832 = vmatprep.subr.mxu0 0.0
    %1833 = vmatpush1.msra.mxu0 0.0
    %1834 = vmatprep.subr.mxu0 0.0
    %1835 = vmatpush1.msra.mxu0 0.0
    %1836 = vmatprep.subr.mxu0 0.0
    %1837 = vmatpush1.msra.mxu0 0.0
    %1838 = vmatprep.mubr.f32.mxu0 0.0
    %1839 = vmatmul.mubr.f32.gmra.mrb[0].mxu0 %v1769
    %v1840 = vpop.f32.mrb[0].mxu0
    %v1841 = vadd.f32 %v1765, %v1840
    %v1842 = vpop.f32.mrb[0].mxu0
    %1843 = vdwg.mxu0
    %v1844 = vld [vmem:[#allocation30] sm:$0xff]
    %v1845 = vld [vmem:[#allocation30 + $0x8] sm:$0xff]
    %v1846 = vld [vmem:[#allocation30 + $0x10] sm:$0xff]
    %v1847 = vld [vmem:[#allocation30 + $0x18] sm:$0xff]
    %v1848 = vld [vmem:[#allocation30 + $0x20] sm:$0xff]
    %v1849 = vld [vmem:[#allocation30 + $0x28] sm:$0xff]
    %v1850 = vld [vmem:[#allocation30 + $0x30] sm:$0xff]
    %v1851 = vld [vmem:[#allocation30 + $0x38] sm:$0xff]
    %v1852 = vld [vmem:[#allocation30 + $0x40] sm:$0xff]
    %v1853 = vld [vmem:[#allocation30 + $0x48] sm:$0xff]
    %v1854 = vld [vmem:[#allocation30 + $0x50] sm:$0xff]
    %v1855 = vld [vmem:[#allocation30 + $0x58] sm:$0xff]
    %v1856 = vld [vmem:[#allocation30 + $0x60] sm:$0xf]
    %v1858 = vsel %vm1690, %v1663, 0
    %v1861 = vsel %vm1694, %v1856, 0
    %1863 = vmatprep.subr.mxu0 0.0
    %1864 = vmatpush1.msra.mxu0 %v1844
    %1865 = vmatprep.subr.mxu0 0.0
    %1866 = vmatpush1.msra.mxu0 %v1845
    %1867 = vmatprep.subr.mxu0 0.0
    %1868 = vmatpush1.msra.mxu0 %v1846
    %1869 = vmatprep.subr.mxu0 0.0
    %1870 = vmatpush1.msra.mxu0 %v1847
    %1871 = vmatprep.subr.mxu0 0.0
    %1872 = vmatpush1.msra.mxu0 %v1848
    %1873 = vmatprep.subr.mxu0 0.0
    %1874 = vmatpush1.msra.mxu0 %v1849
    %1875 = vmatprep.subr.mxu0 0.0
    %1876 = vmatpush1.msra.mxu0 %v1850
    %1877 = vmatprep.subr.mxu0 0.0
    %1878 = vmatpush1.msra.mxu0 %v1851
    %1879 = vmatprep.subr.mxu0 0.0
    %1880 = vmatpush1.msra.mxu0 %v1852
    %1881 = vmatprep.subr.mxu0 0.0
    %1882 = vmatpush1.msra.mxu0 %v1853
    %1883 = vmatprep.subr.mxu0 0.0
    %1884 = vmatpush1.msra.mxu0 %v1854
    %1885 = vmatprep.subr.mxu0 0.0
    %1886 = vmatpush1.msra.mxu0 %v1855
    %1887 = vmatprep.subr.mxu0 0.0
    %1888 = vmatpush1.msra.mxu0 %v1861
    %1889 = vmatprep.subr.mxu0 0.0
    %1890 = vmatpush1.msra.mxu0 0.0
    %1891 = vmatprep.subr.mxu0 0.0
    %1892 = vmatpush1.msra.mxu0 0.0
    %1893 = vmatprep.subr.mxu0 0.0
    %1894 = vmatpush1.msra.mxu0 0.0
    %1895 = vmatprep.subr.mxu0 0.0
    %1896 = vmatpush1.msra.mxu0 0.0
    %1897 = vmatprep.subr.mxu0 0.0
    %1898 = vmatpush1.msra.mxu0 0.0
    %1899 = vmatprep.subr.mxu0 0.0
    %1900 = vmatpush1.msra.mxu0 0.0
    %1901 = vmatprep.subr.mxu0 0.0
    %1902 = vmatpush1.msra.mxu0 0.0
    %1903 = vmatprep.subr.mxu0 0.0
    %1904 = vmatpush1.msra.mxu0 0.0
    %1905 = vmatprep.subr.mxu0 0.0
    %1906 = vmatpush1.msra.mxu0 0.0
    %1907 = vmatprep.subr.mxu0 0.0
    %1908 = vmatpush1.msra.mxu0 0.0
    %1909 = vmatprep.subr.mxu0 0.0
    %1910 = vmatpush1.msra.mxu0 0.0
    %1911 = vmatprep.subr.mxu0 0.0
    %1912 = vmatpush1.msra.mxu0 0.0
    %1913 = vmatprep.subr.mxu0 0.0
    %1914 = vmatpush1.msra.mxu0 0.0
    %1915 = vmatprep.subr.mxu0 0.0
    %1916 = vmatpush1.msra.mxu0 0.0
    %1917 = vmatprep.subr.mxu0 0.0
    %1918 = vmatpush1.msra.mxu0 0.0
    %1919 = vmatprep.subr.mxu0 0.0
    %1920 = vmatpush1.msra.mxu0 0.0
    %1921 = vmatprep.subr.mxu0 0.0
    %1922 = vmatpush1.msra.mxu0 0.0
    %1923 = vmatprep.subr.mxu0 0.0
    %1924 = vmatpush1.msra.mxu0 0.0
    %1925 = vmatprep.subr.mxu0 0.0
    %1926 = vmatpush1.msra.mxu0 0.0
    %1927 = vmatprep.mubr.f32.mxu0 0.0
    %1928 = vmatmul.mubr.f32.gmra.mrb[0].mxu0 %v1858
    %v1929 = vpop.f32.mrb[0].mxu0
    %v1930 = vadd.f32 0.0, %v1929
    %v1931 = vpop.f32.mrb[0].mxu0
    %1932 = vdwg.mxu0
    %v1933 = vadd.f32 %v1841, %v1930
    %v1934 = vld [vmem:[#allocation31] sm:$0x7]
    %v1935 = vlaneseq
    %v1936 = vshrl.u32 %v1935, 7
    %v1937 = vsub.s32 0, %v1936
    %v1938 = vrot.slane %v1934, %v1937
    %v1939 = vadd.f32 %v1933, %v1938
    %vm1940 = vcmp.ge.f32.partialorder %v1939, 0.0
    %v1941 = vmul.f32 %v1939, 0.25
    %v1942 = vsel %vm1940, %v1939, %v1941
    %v1943 = vlaneseq
    %v1944 = vshrl.u32 %v1943, 7
    %v1945 = vsub.s32 1, %v1944
    %v1946 = vrot.slane %v1934, %v1945
    %v1947 = vmul.f32 %v1942, %v1946
    %v1948 = vlaneseq
    %v1949 = vshrl.u32 %v1948, 7
    %v1950 = vsub.s32 2, %v1949
    %v1951 = vrot.slane %v1934, %v1950
    %v1952 = vadd.f32 %v1947, %v1951
    %v1953 = vld [vmem:[%s25] sm:$0xff]
    %v1954 = vld [vmem:[%s25 + $0x8] sm:$0xff]
    %v1955 = vld [vmem:[%s25 + $0x10] sm:$0xff]
    %v1956 = vld [vmem:[%s25 + $0x18] sm:$0xff]
    %v1957 = vld [vmem:[%s25 + $0x20] sm:$0xff]
    %v1958 = vld [vmem:[%s25 + $0x28] sm:$0xff]
    %v1959 = vld [vmem:[%s25 + $0x30] sm:$0xff]
    %v1960 = vld [vmem:[%s25 + $0x38] sm:$0xff]
    %v1961 = vld [vmem:[%s25 + $0x40] sm:$0xff]
    %v1962 = vld [vmem:[%s25 + $0x48] sm:$0xff]
    %v1963 = vld [vmem:[%s25 + $0x50] sm:$0xff]
    %v1964 = vld [vmem:[%s25 + $0x58] sm:$0xff]
    %v1965 = vld [vmem:[%s25 + $0x60] sm:$0xf]
    %v1966 = vld [vmem:[%s26] sm:$0x1]
    %v1968 = vlaneseq
    %v1969 = vshrl.u32 %v1968, 7
    %v1970 = vsub.s32 0, %v1969
    %v1971 = vrot.slane %v1966, %v1970
    %v1974 = vsel %vm1690, %v1952, 0
    %v1977 = vsel %vm1694, %v1965, 0
    %1979 = vmatprep.subr.mxu0 0.0
    %1980 = vmatpush1.msra.mxu0 %v1953
    %1981 = vmatprep.subr.mxu0 0.0
    %1982 = vmatpush1.msra.mxu0 %v1954
    %1983 = vmatprep.subr.mxu0 0.0
    %1984 = vmatpush1.msra.mxu0 %v1955
    %1985 = vmatprep.subr.mxu0 0.0
    %1986 = vmatpush1.msra.mxu0 %v1956
    %1987 = vmatprep.subr.mxu0 0.0
    %1988 = vmatpush1.msra.mxu0 %v1957
    %1989 = vmatprep.subr.mxu0 0.0
    %1990 = vmatpush1.msra.mxu0 %v1958
    %1991 = vmatprep.subr.mxu0 0.0
    %1992 = vmatpush1.msra.mxu0 %v1959
    %1993 = vmatprep.subr.mxu0 0.0
    %1994 = vmatpush1.msra.mxu0 %v1960
    %1995 = vmatprep.subr.mxu0 0.0
    %1996 = vmatpush1.msra.mxu0 %v1961
    %1997 = vmatprep.subr.mxu0 0.0
    %1998 = vmatpush1.msra.mxu0 %v1962
    %1999 = vmatprep.subr.mxu0 0.0
    %2000 = vmatpush1.msra.mxu0 %v1963
    %2001 = vmatprep.subr.mxu0 0.0
    %2002 = vmatpush1.msra.mxu0 %v1964
    %2003 = vmatprep.subr.mxu0 0.0
    %2004 = vmatpush1.msra.mxu0 %v1977
    %2005 = vmatprep.subr.mxu0 0.0
    %2006 = vmatpush1.msra.mxu0 0.0
    %2007 = vmatprep.subr.mxu0 0.0
    %2008 = vmatpush1.msra.mxu0 0.0
    %2009 = vmatprep.subr.mxu0 0.0
    %2010 = vmatpush1.msra.mxu0 0.0
    %2011 = vmatprep.subr.mxu0 0.0
    %2012 = vmatpush1.msra.mxu0 0.0
    %2013 = vmatprep.subr.mxu0 0.0
    %2014 = vmatpush1.msra.mxu0 0.0
    %2015 = vmatprep.subr.mxu0 0.0
    %2016 = vmatpush1.msra.mxu0 0.0
    %2017 = vmatprep.subr.mxu0 0.0
    %2018 = vmatpush1.msra.mxu0 0.0
    %2019 = vmatprep.subr.mxu0 0.0
    %2020 = vmatpush1.msra.mxu0 0.0
    %2021 = vmatprep.subr.mxu0 0.0
    %2022 = vmatpush1.msra.mxu0 0.0
    %2023 = vmatprep.subr.mxu0 0.0
    %2024 = vmatpush1.msra.mxu0 0.0
    %2025 = vmatprep.subr.mxu0 0.0
    %2026 = vmatpush1.msra.mxu0 0.0
    %2027 = vmatprep.subr.mxu0 0.0
    %2028 = vmatpush1.msra.mxu0 0.0
    %2029 = vmatprep.subr.mxu0 0.0
    %2030 = vmatpush1.msra.mxu0 0.0
    %2031 = vmatprep.subr.mxu0 0.0
    %2032 = vmatpush1.msra.mxu0 0.0
    %2033 = vmatprep.subr.mxu0 0.0
    %2034 = vmatpush1.msra.mxu0 0.0
    %2035 = vmatprep.subr.mxu0 0.0
    %2036 = vmatpush1.msra.mxu0 0.0
    %2037 = vmatprep.subr.mxu0 0.0
    %2038 = vmatpush1.msra.mxu0 0.0
    %2039 = vmatprep.subr.mxu0 0.0
    %2040 = vmatpush1.msra.mxu0 0.0
    %2041 = vmatprep.subr.mxu0 0.0
    %2042 = vmatpush1.msra.mxu0 0.0
    %2043 = vmatprep.mubr.f32.mxu0 0.0
    %2044 = vmatmul.mubr.f32.gmra.mrb[0].mxu0 %v1974
    %v2045 = vpop.f32.mrb[0].mxu0
    %v2046 = vadd.f32 %v1971, %v2045
    %v2047 = vpop.f32.mrb[0].mxu0
    %2048 = vdwg.mxu0
    %vm2049 = vcmask 15360
    %2050 = vst.msk [vmem:[%s27] sm:$0xff] %vm2049, %v2046
    // Predicated region
    $region190: #{nn_concat_forward.1} parent=1 // pred_check
      _
    $region191: #{nn_concat_forward.1} parent=1 // pred_check_branch
      %2052 = sbr.rel (0) target = $region193
    $region192: #{nn_concat_forward.1} parent=1 // pred_region
      _
    $region193: #{nn_concat_forward.1} parent=1 // pred_fallthru
      _
    // Predicated region
    $region194: #{nn_concat_forward.1} parent=1 // pred_check
      _
    $region195: #{nn_concat_forward.1} parent=1 // pred_check_branch
      %2054 = sbr.rel (0) target = $region197
    $region196: #{nn_concat_forward.1} parent=1 // pred_region
      _
    $region197: #{nn_concat_forward.1} parent=1 // pred_fallthru
      _
    %2055 = vsyncpa [#allocation3], 1
    %2056 = vsyncpa [#allocation5], 1
    %2057 = vsyncpa [#allocation8], 1
    %2058 = vsyncpa [#allocation11], 1
    %2059 = vsyncpa [#allocation14], 1
    %2060 = vsyncpa [#allocation17], 1
    %2061 = vsyncpa [#allocation20], 1
    %2062 = vsyncpa [#allocation23], 1
    %2063 = vsyncpa [#allocation26], 1
    %2064 = vsyncpa [#allocation29], 1
    %2065 = vsyncpa [#allocation32], 1

</llo_original>
